<compile_context>
chip_gen: v6e
topology: v6e:2x2x1
jax: 0.10.0
libtpu: 0.0.40
codegen_flags: <defaults>
</compile_context>

<pallas_src>
from functools import partial

import numpy as np
import jax
import jax.numpy as jnp
from jax.experimental import pallas as pl
from jax.experimental.pallas import tpu as pltpu

# ----------------------- small config (consistent with MLPMixer.__init__) ----
B = 2
IN_CH = 3
IMAGE = 16
PATCH = 4
DIM = 32
DEPTH = 2
TOKEN_DIM = 16
CHANNEL_DIM = 64
NUM_CLASSES = 10
NPATCH = (IMAGE // PATCH) ** 2            # 16 patches
CPP = IN_CH * PATCH * PATCH               # 48 = flattened patch length
EPS = 1e-5                                # torch.nn.LayerNorm default eps
LANES = 128
SUBLANES = 8
_GELU_C = float(np.sqrt(2.0 / np.pi))


# ------------------------------- math helpers (used in-kernel and in ref) ----
def _gelu(x):
    # tanh-approximate GELU (EUP tanh + a few VALU ops).
    # TODO(synk): torch.nn.GELU() default is the exact erf form; the tanh
    # approximation deviates by up to ~1e-3*|x| (covered by the test tolerance).
    return 0.5 * x * (1.0 + jnp.tanh(_GELU_C * (x + 0.044715 * x * x * x)))


def _layer_norm(x, g, b):
    mu = jnp.mean(x, axis=-1, keepdims=True)
    var = jnp.mean(jnp.square(x - mu), axis=-1, keepdims=True)
    return (x - mu) * jax.lax.rsqrt(var + EPS) * g + b


def _dot(a, b):
    # DEFAULT precision: one bf16 MXU pass, f32 accumulation.
    return jnp.dot(a, b, preferred_element_type=jnp.float32)


def _block_diag_rep(a, n):
    """Block-diagonal matrix with `n` copies of `a` on the diagonal."""
    if n == 1:
        return a
    r, c = a.shape
    out = jnp.zeros((n * r, n * c), a.dtype)
    for i in range(n):
        out = out.at[i * r:(i + 1) * r, i * c:(i + 1) * c].set(a)
    return out


# ----------------------------------------------- host-side parameter packing --
def pack_params(params, bb):
    """Pack all weights into one (rows, 128) f32 blob; 8-row aligned chunks.

    Token-mix weights are stored transposed AND batch-block-diagonal (for a
    batch block of `bb` images), so the kernel needs no transposes, no
    per-image loops and no concatenates.  A (bb, bb*NPATCH) pooling matrix
    turns the per-image mean over patches into one matmul.
    Returns (blob, index) with index[name] = (row_offset, rows, cols).
    """
    entries = []

    def add(name, arr):
        entries.append((name, jnp.asarray(arr, jnp.float32)))

    add("emb_w", params["emb_w"])                           # (CPP, DIM)
    add("emb_b", params["emb_b"])                           # (1, DIM)
    for d in range(DEPTH):
        add(f"ln1_g{d}", params["ln1_g"][d])                # (1, DIM)
        add(f"ln1_b{d}", params["ln1_b"][d])
        add(f"tw1T{d}", _block_diag_rep(params["tw1"][d].T, bb))   # (bb*T, bb*N)
        add(f"tb1c{d}", jnp.tile(params["tb1"][d].T, (bb, 1)))     # (bb*T, 1)
        add(f"tw2T{d}", _block_diag_rep(params["tw2"][d].T, bb))   # (bb*N, bb*T)
        add(f"tb2c{d}", jnp.tile(params["tb2"][d].T, (bb, 1)))     # (bb*N, 1)
        add(f"ln2_g{d}", params["ln2_g"][d])
        add(f"ln2_b{d}", params["ln2_b"][d])
        add(f"cw1_{d}", params["cw1"][d])                   # (DIM, CHANNEL_DIM)
        add(f"cb1_{d}", params["cb1"][d])                   # (1, CHANNEL_DIM)
        add(f"cw2_{d}", params["cw2"][d])                   # (CHANNEL_DIM, DIM)
        add(f"cb2_{d}", params["cb2"][d])                   # (1, DIM)
    add("lnf_g", params["lnf_g"])
    add("lnf_b", params["lnf_b"])
    add("pool", _block_diag_rep(
        jnp.full((1, NPATCH), 1.0 / NPATCH, jnp.float32), bb))     # (bb, bb*N)
    add("head_w", params["head_w"])                         # (DIM, NUM_CLASSES)
    add("head_b", params["head_b"])                         # (1, NUM_CLASSES)

    index = {}
    chunks = []
    row = 0
    for name, a in entries:
        r, c = a.shape
        pad_r = (-r) % SUBLANES
        chunks.append(jnp.pad(a, ((0, pad_r), (0, LANES - c))))
        index[name] = (row, r, c)
        row += r + pad_r
    blob = jnp.concatenate(chunks, axis=0)                  # (rows, 128), rows % 8 == 0
    return blob, index


# ------------------------------------------------------------ Pallas kernel --
def make_kernel(index):
    """Kernel processing one batch block (bb images, bb*NPATCH token rows)."""

    def kernel(patches_ref,   # (bb*NPATCH, CPP)
               blob_ref,      # (rows, 128) packed weights
               out_ref):      # (1, bb, 128) lane-dense logits (cols >= 10 are 0)

        def w(name, full_lanes=False):
            r0, nr, nc = index[name]
            v = blob_ref[pl.ds(r0, nr), :]                  # (nr, 128) static window
            return v if full_lanes else v[:, :nc]

        # patch embedding: Conv2d(k=p, stride=p) == patches @ W + b
        x = _dot(patches_ref[...], w("emb_w")) + w("emb_b")         # (bb*N, D)

        for d in range(DEPTH):                                       # static unroll
            # --- token mixer (pre-transposed, batch-block-diagonal weights) ---
            y = _layer_norm(x, w(f"ln1_g{d}"), w(f"ln1_b{d}"))       # (bb*N, D)
            h = _gelu(_dot(w(f"tw1T{d}"), y) + w(f"tb1c{d}"))        # (bb*T, D)
            x = x + _dot(w(f"tw2T{d}"), h) + w(f"tb2c{d}")           # residual
            # --- channel mixer: LN -> MLP(D->CD->D) ---
            y = _layer_norm(x, w(f"ln2_g{d}"), w(f"ln2_b{d}"))
            h = _gelu(_dot(y, w(f"cw1_{d}")) + w(f"cb1_{d}"))        # (bb*N, CD)
            x = x + _dot(h, w(f"cw2_{d}")) + w(f"cb2_{d}")           # residual

        # final LN -> mean over patches (pooling matmul) -> classification head
        y = _layer_norm(x, w("lnf_g"), w("lnf_b"))                   # (bb*N, D)
        pooled = _dot(w("pool"), y)                                  # (bb, D)
        head_w = w("head_w", full_lanes=True)                        # (D, 128), zero-padded
        head_b = w("head_b", full_lanes=True)                        # (1, 128), zero-padded
        logits = _dot(pooled, head_w) + head_b                       # (bb, 128)
        out_ref[...] = logits[None]                                  # (1, bb, 128)

        # TODO(synk): nn.Dropout layers use p=0.0 (identity), so they are omitted.

    return kernel


# ----------------------------------------------------------- glue / wrapper --
def extract_patches(x_nchw):
    # (B, C, H, W) -> (B, N, C*p*p): patch index ordered (h, w), pixels (c, kh, kw);
    # matches Conv2d(k=p, stride=p) followed by Rearrange('b c h w -> b (h w) c').
    b, c, h, w = x_nchw.shape
    hp, wp = h // PATCH, w // PATCH
    p = x_nchw.reshape(b, c, hp, PATCH, wp, PATCH)
    p = p.transpose(0, 2, 4, 1, 3, 5)
    return p.reshape(b, hp * wp, c * PATCH * PATCH)


def pick_grid_steps(batch):
    # v7x has 2 TensorCores -> keep a parallel grid over the batch.
    # v5e/v6e have 1 TC -> a grid is just a serial loop, so fuse the batch.
    try:
        kind = jax.devices()[0].device_kind.lower()
    except Exception:
        kind = ""
    if ("v7" in kind or "7x" in kind) and batch % 2 == 0:
        return 2
    return 1


@partial(jax.jit, static_argnames=("steps",))
def _forward(x_nchw, params, steps):
    batch = x_nchw.shape[0]
    bb = batch // steps
    patches = extract_patches(x_nchw).astype(jnp.float32)
    patches = patches.reshape(batch * NPATCH, CPP)           # batch folded into M
    blob, index = pack_params(params, bb)
    kernel = make_kernel(index)

    out = pl.pallas_call(
        kernel,
        out_shape=jax.ShapeDtypeStruct((steps, bb, LANES), jnp.float32),
        grid=(steps,),
        in_specs=[
            pl.BlockSpec((bb * NPATCH, CPP), lambda i: (i, 0)),
            pl.BlockSpec(blob.shape, lambda i: (0, 0)),      # single weight blob
        ],
        out_specs=pl.BlockSpec((1, bb, LANES), lambda i: (i, 0, 0)),
        compiler_params=pltpu.CompilerParams(dimension_semantics=("parallel",)),
    )(patches, blob)
    return out.reshape(batch, LANES)[:, :NUM_CLASSES]


def mlp_mixer_pallas(x_nchw, params):
    return _forward(x_nchw, params, pick_grid_steps(x_nchw.shape[0]))


# ----------------------------------------------------- deterministic params --
def init_params(key):
    n_keys = 4 + DEPTH * 8
    keys = iter(jax.random.split(key, n_keys))

    def lin(shape, fan_in):
        return jax.random.normal(next(keys), shape, jnp.float32) / np.sqrt(fan_in)

    def bias(shape):
        return jax.random.normal(next(keys), shape, jnp.float32) * 0.01

    p = {}
    p["emb_w"] = lin((CPP, DIM), CPP)
    p["emb_b"] = bias((1, DIM))
    lists = {n: [] for n in ("ln1_g", "ln1_b", "tw1", "tb1", "tw2", "tb2",
                             "ln2_g", "ln2_b", "cw1", "cb1", "cw2", "cb2")}
    for _ in range(DEPTH):
        lists["ln1_g"].append(jnp.ones((1, DIM), jnp.float32))
        lists["ln1_b"].append(jnp.zeros((1, DIM), jnp.float32))
        lists["tw1"].append(lin((NPATCH, TOKEN_DIM), NPATCH))
        lists["tb1"].append(bias((1, TOKEN_DIM)))
        lists["tw2"].append(lin((TOKEN_DIM, NPATCH), TOKEN_DIM))
        lists["tb2"].append(bias((1, NPATCH)))
        lists["ln2_g"].append(jnp.ones((1, DIM), jnp.float32))
        lists["ln2_b"].append(jnp.zeros((1, DIM), jnp.float32))
        lists["cw1"].append(lin((DIM, CHANNEL_DIM), DIM))
        lists["cb1"].append(bias((1, CHANNEL_DIM)))
        lists["cw2"].append(lin((CHANNEL_DIM, DIM), CHANNEL_DIM))
        lists["cb2"].append(bias((1, DIM)))
    for name, lst in lists.items():
        p[name] = jnp.stack(lst, axis=0)
    p["lnf_g"] = jnp.ones((1, DIM), jnp.float32)
    p["lnf_b"] = jnp.zeros((1, DIM), jnp.float32)
    p["head_w"] = lin((DIM, NUM_CLASSES), DIM)
    p["head_b"] = bias((1, NUM_CLASSES))
    return p


# ------------------------------------------------------- pure-JAX reference --
def mlp_mixer_ref(x_nchw, params):
    x = extract_patches(x_nchw).astype(jnp.float32)                 # (B, N, CPP)
    x = jnp.einsum("bnc,cd->bnd", x, params["emb_w"]) + params["emb_b"]
    for d in range(DEPTH):
        y = _layer_norm(x, params["ln1_g"][d], params["ln1_b"][d])
        z = jnp.swapaxes(y, 1, 2)                                   # (B, D, N)
        h = _gelu(jnp.einsum("bdn,nt->bdt", z, params["tw1"][d]) + params["tb1"][d])
        t = jnp.einsum("bdt,tn->bdn", h, params["tw2"][d]) + params["tb2"][d]
        x = x + jnp.swapaxes(t, 1, 2)
        y = _layer_norm(x, params["ln2_g"][d], params["ln2_b"][d])
        h = _gelu(jnp.einsum("bnd,dc->bnc", y, params["cw1"][d]) + params["cb1"][d])
        x = x + jnp.einsum("bnc,cd->bnd", h, params["cw2"][d]) + params["cb2"][d]
    y = _layer_norm(x, params["lnf_g"], params["lnf_b"])
    pooled = jnp.mean(y, axis=1)                                    # (B, DIM)
    return jnp.dot(pooled, params["head_w"]) + params["head_b"]


# ----------------------------------------------------------------------- main
if __name__ == "__main__":
    key = jax.random.PRNGKey(0)
    k_x, k_p = jax.random.split(key)
    x = jax.random.normal(k_x, (B, IN_CH, IMAGE, IMAGE), jnp.float32)
    params = init_params(k_p)

    out = jax.block_until_ready(mlp_mixer_pallas(x, params))
    ref = jax.block_until_ready(mlp_mixer_ref(x, params))

    assert out.shape == (B, NUM_CLASSES)
    np.testing.assert_allclose(np.asarray(out), np.asarray(ref), rtol=2e-3, atol=2e-3)
    print("KERNEL_OK")
</pallas_src>

<mosaic_0001>
module attributes {stable_mosaic.version = 11 : i64} {
  func.func @kernel(%arg0: i32, %arg1: memref<32x48xf32, #tpu.memory_space<vmem>>, %arg2: memref<664x128xf32, #tpu.memory_space<vmem>>, %arg3: memref<1x2x128xf32, #tpu.memory_space<vmem>>) attributes {dimension_semantics = [#tpu.dimension_semantics<parallel>], iteration_bounds = array<i64: 1>, scalar_prefetch = 0 : i64, scratch_operands = 0 : i64, tpu.core_type = #tpu.core_type<tc>, window_params = [{transform_indices = @transform_0, window_bounds = array<i64: 32, 48>}, {pipeline_mode = #tpu.pipeline_mode<synchronous>, transform_indices = @transform_1, window_bounds = array<i64: 664, 128>}, {transform_indices = @transform_2, window_bounds = array<i64: 1, 2, 128>}]} {
    %c0 = arith.constant 0 : index
    %c0_0 = arith.constant 0 : index
    %0 = vector.load %arg1[%c0, %c0_0] : memref<32x48xf32, #tpu.memory_space<vmem>>, vector<32x48xf32>
    %c0_1 = arith.constant 0 : index
    %c0_2 = arith.constant 0 : index
    %1 = vector.load %arg2[%c0_1, %c0_2] : memref<664x128xf32, #tpu.memory_space<vmem>>, vector<48x128xf32>
    %2 = vector.extract_strided_slice %1 {offsets = [0, 0], sizes = [48, 32], strides = [1, 1]} : vector<48x128xf32> to vector<48x32xf32>
    %cst = arith.constant dense<0.000000e+00> : vector<32x32xf32>
    %3 = tpu.matmul %0, %2, %cst {dimension_numbers = #tpu.dot_dimension_numbers<[1], [0], [0], [1], [0, 0, 1, 1], [], []>} : vector<32x48xf32>, vector<48x32xf32>, vector<32x32xf32> -> vector<32x32xf32>
    %c48 = arith.constant 48 : index
    %c0_3 = arith.constant 0 : index
    %4 = vector.load %arg2[%c48, %c0_3] : memref<664x128xf32, #tpu.memory_space<vmem>>, vector<1x128xf32>
    %5 = vector.extract_strided_slice %4 {offsets = [0, 0], sizes = [1, 32], strides = [1, 1]} : vector<1x128xf32> to vector<1x32xf32>
    %6 = vector.broadcast %5 : vector<1x32xf32> to vector<32x32xf32>
    %7 = arith.addf %3, %6 : vector<32x32xf32>
    %c56 = arith.constant 56 : index
    %c0_4 = arith.constant 0 : index
    %8 = vector.load %arg2[%c56, %c0_4] : memref<664x128xf32, #tpu.memory_space<vmem>>, vector<1x128xf32>
    %9 = vector.extract_strided_slice %8 {offsets = [0, 0], sizes = [1, 32], strides = [1, 1]} : vector<1x128xf32> to vector<1x32xf32>
    %c64 = arith.constant 64 : index
    %c0_5 = arith.constant 0 : index
    %10 = vector.load %arg2[%c64, %c0_5] : memref<664x128xf32, #tpu.memory_space<vmem>>, vector<1x128xf32>
    %11 = vector.extract_strided_slice %10 {offsets = [0, 0], sizes = [1, 32], strides = [1, 1]} : vector<1x128xf32> to vector<1x32xf32>
    %cst_6 = arith.constant dense<0.000000e+00> : vector<32xf32>
    %12 = vector.multi_reduction <add>, %7, %cst_6 [1] : vector<32x32xf32> to vector<32xf32>
    %13 = vector.shape_cast %12 : vector<32xf32> to vector<32x1xf32>
    %cst_7 = arith.constant 3.200000e+01 : f32
    %14 = vector.broadcast %cst_7 : f32 to vector<32x1xf32>
    %15 = arith.divf %13, %14 : vector<32x1xf32>
    %16 = vector.broadcast %15 : vector<32x1xf32> to vector<32x32xf32>
    %17 = arith.subf %7, %16 : vector<32x32xf32>
    %18 = arith.mulf %17, %17 : vector<32x32xf32>
    %cst_8 = arith.constant dense<0.000000e+00> : vector<32xf32>
    %19 = vector.multi_reduction <add>, %18, %cst_8 [1] : vector<32x32xf32> to vector<32xf32>
    %20 = vector.shape_cast %19 : vector<32xf32> to vector<32x1xf32>
    %cst_9 = arith.constant 3.200000e+01 : f32
    %21 = vector.broadcast %cst_9 : f32 to vector<32x1xf32>
    %22 = arith.divf %20, %21 : vector<32x1xf32>
    %23 = vector.broadcast %15 : vector<32x1xf32> to vector<32x32xf32>
    %24 = arith.subf %7, %23 : vector<32x32xf32>
    %cst_10 = arith.constant 9.99999974E-6 : f32
    %25 = vector.broadcast %cst_10 : f32 to vector<32x1xf32>
    %26 = arith.addf %22, %25 : vector<32x1xf32>
    %27 = math.rsqrt %26 : vector<32x1xf32>
    %28 = vector.broadcast %27 : vector<32x1xf32> to vector<32x32xf32>
    %29 = arith.mulf %24, %28 : vector<32x32xf32>
    %30 = vector.broadcast %9 : vector<1x32xf32> to vector<32x32xf32>
    %31 = arith.mulf %29, %30 : vector<32x32xf32>
    %32 = vector.broadcast %11 : vector<1x32xf32> to vector<32x32xf32>
    %33 = arith.addf %31, %32 : vector<32x32xf32>
    %c72 = arith.constant 72 : index
    %c0_11 = arith.constant 0 : index
    %34 = vector.load %arg2[%c72, %c0_11] : memref<664x128xf32, #tpu.memory_space<vmem>>, vector<32x128xf32>
    %35 = vector.extract_strided_slice %34 {offsets = [0, 0], sizes = [32, 32], strides = [1, 1]} : vector<32x128xf32> to vector<32x32xf32>
    %cst_12 = arith.constant dense<0.000000e+00> : vector<32x32xf32>
    %36 = tpu.matmul %35, %33, %cst_12 {dimension_numbers = #tpu.dot_dimension_numbers<[1], [0], [0], [1], [0, 0, 1, 1], [], []>} : vector<32x32xf32>, vector<32x32xf32>, vector<32x32xf32> -> vector<32x32xf32>
    %c104 = arith.constant 104 : index
    %c0_13 = arith.constant 0 : index
    %37 = vector.load %arg2[%c104, %c0_13] : memref<664x128xf32, #tpu.memory_space<vmem>>, vector<32x128xf32>
    %38 = vector.extract_strided_slice %37 {offsets = [0, 0], sizes = [32, 1], strides = [1, 1]} : vector<32x128xf32> to vector<32x1xf32>
    %39 = vector.broadcast %38 : vector<32x1xf32> to vector<32x32xf32>
    %40 = arith.addf %36, %39 : vector<32x32xf32>
    %cst_14 = arith.constant 5.000000e-01 : f32
    %41 = vector.broadcast %cst_14 : f32 to vector<32x32xf32>
    %42 = arith.mulf %41, %40 : vector<32x32xf32>
    %cst_15 = arith.constant 4.471500e-02 : f32
    %43 = vector.broadcast %cst_15 : f32 to vector<32x32xf32>
    %44 = arith.mulf %43, %40 : vector<32x32xf32>
    %45 = arith.mulf %44, %40 : vector<32x32xf32>
    %46 = arith.mulf %45, %40 : vector<32x32xf32>
    %47 = arith.addf %40, %46 : vector<32x32xf32>
    %cst_16 = arith.constant 0.797884583 : f32
    %48 = vector.broadcast %cst_16 : f32 to vector<32x32xf32>
    %49 = arith.mulf %48, %47 : vector<32x32xf32>
    %50 = math.tanh %49 : vector<32x32xf32>
    %cst_17 = arith.constant 1.000000e+00 : f32
    %51 = vector.broadcast %cst_17 : f32 to vector<32x32xf32>
    %52 = arith.addf %51, %50 : vector<32x32xf32>
    %53 = arith.mulf %42, %52 : vector<32x32xf32>
    %c136 = arith.constant 136 : index
    %c0_18 = arith.constant 0 : index
    %54 = vector.load %arg2[%c136, %c0_18] : memref<664x128xf32, #tpu.memory_space<vmem>>, vector<32x128xf32>
    %55 = vector.extract_strided_slice %54 {offsets = [0, 0], sizes = [32, 32], strides = [1, 1]} : vector<32x128xf32> to vector<32x32xf32>
    %cst_19 = arith.constant dense<0.000000e+00> : vector<32x32xf32>
    %56 = tpu.matmul %55, %53, %cst_19 {dimension_numbers = #tpu.dot_dimension_numbers<[1], [0], [0], [1], [0, 0, 1, 1], [], []>} : vector<32x32xf32>, vector<32x32xf32>, vector<32x32xf32> -> vector<32x32xf32>
    %57 = arith.addf %7, %56 : vector<32x32xf32>
    %c168 = arith.constant 168 : index
    %c0_20 = arith.constant 0 : index
    %58 = vector.load %arg2[%c168, %c0_20] : memref<664x128xf32, #tpu.memory_space<vmem>>, vector<32x128xf32>
    %59 = vector.extract_strided_slice %58 {offsets = [0, 0], sizes = [32, 1], strides = [1, 1]} : vector<32x128xf32> to vector<32x1xf32>
    %60 = vector.broadcast %59 : vector<32x1xf32> to vector<32x32xf32>
    %61 = arith.addf %57, %60 : vector<32x32xf32>
    %c200 = arith.constant 200 : index
    %c0_21 = arith.constant 0 : index
    %62 = vector.load %arg2[%c200, %c0_21] : memref<664x128xf32, #tpu.memory_space<vmem>>, vector<1x128xf32>
    %63 = vector.extract_strided_slice %62 {offsets = [0, 0], sizes = [1, 32], strides = [1, 1]} : vector<1x128xf32> to vector<1x32xf32>
    %c208 = arith.constant 208 : index
    %c0_22 = arith.constant 0 : index
    %64 = vector.load %arg2[%c208, %c0_22] : memref<664x128xf32, #tpu.memory_space<vmem>>, vector<1x128xf32>
    %65 = vector.extract_strided_slice %64 {offsets = [0, 0], sizes = [1, 32], strides = [1, 1]} : vector<1x128xf32> to vector<1x32xf32>
    %cst_23 = arith.constant dense<0.000000e+00> : vector<32xf32>
    %66 = vector.multi_reduction <add>, %61, %cst_23 [1] : vector<32x32xf32> to vector<32xf32>
    %67 = vector.shape_cast %66 : vector<32xf32> to vector<32x1xf32>
    %cst_24 = arith.constant 3.200000e+01 : f32
    %68 = vector.broadcast %cst_24 : f32 to vector<32x1xf32>
    %69 = arith.divf %67, %68 : vector<32x1xf32>
    %70 = vector.broadcast %69 : vector<32x1xf32> to vector<32x32xf32>
    %71 = arith.subf %61, %70 : vector<32x32xf32>
    %72 = arith.mulf %71, %71 : vector<32x32xf32>
    %cst_25 = arith.constant dense<0.000000e+00> : vector<32xf32>
    %73 = vector.multi_reduction <add>, %72, %cst_25 [1] : vector<32x32xf32> to vector<32xf32>
    %74 = vector.shape_cast %73 : vector<32xf32> to vector<32x1xf32>
    %cst_26 = arith.constant 3.200000e+01 : f32
    %75 = vector.broadcast %cst_26 : f32 to vector<32x1xf32>
    %76 = arith.divf %74, %75 : vector<32x1xf32>
    %77 = vector.broadcast %69 : vector<32x1xf32> to vector<32x32xf32>
    %78 = arith.subf %61, %77 : vector<32x32xf32>
    %cst_27 = arith.constant 9.99999974E-6 : f32
    %79 = vector.broadcast %cst_27 : f32 to vector<32x1xf32>
    %80 = arith.addf %76, %79 : vector<32x1xf32>
    %81 = math.rsqrt %80 : vector<32x1xf32>
    %82 = vector.broadcast %81 : vector<32x1xf32> to vector<32x32xf32>
    %83 = arith.mulf %78, %82 : vector<32x32xf32>
    %84 = vector.broadcast %63 : vector<1x32xf32> to vector<32x32xf32>
    %85 = arith.mulf %83, %84 : vector<32x32xf32>
    %86 = vector.broadcast %65 : vector<1x32xf32> to vector<32x32xf32>
    %87 = arith.addf %85, %86 : vector<32x32xf32>
    %c216 = arith.constant 216 : index
    %c0_28 = arith.constant 0 : index
    %88 = vector.load %arg2[%c216, %c0_28] : memref<664x128xf32, #tpu.memory_space<vmem>>, vector<32x128xf32>
    %89 = vector.extract_strided_slice %88 {offsets = [0, 0], sizes = [32, 64], strides = [1, 1]} : vector<32x128xf32> to vector<32x64xf32>
    %cst_29 = arith.constant dense<0.000000e+00> : vector<32x64xf32>
    %90 = tpu.matmul %87, %89, %cst_29 {dimension_numbers = #tpu.dot_dimension_numbers<[1], [0], [0], [1], [0, 0, 1, 1], [], []>} : vector<32x32xf32>, vector<32x64xf32>, vector<32x64xf32> -> vector<32x64xf32>
    %c248 = arith.constant 248 : index
    %c0_30 = arith.constant 0 : index
    %91 = vector.load %arg2[%c248, %c0_30] : memref<664x128xf32, #tpu.memory_space<vmem>>, vector<1x128xf32>
    %92 = vector.extract_strided_slice %91 {offsets = [0, 0], sizes = [1, 64], strides = [1, 1]} : vector<1x128xf32> to vector<1x64xf32>
    %93 = vector.broadcast %92 : vector<1x64xf32> to vector<32x64xf32>
    %94 = arith.addf %90, %93 : vector<32x64xf32>
    %cst_31 = arith.constant 5.000000e-01 : f32
    %95 = vector.broadcast %cst_31 : f32 to vector<32x64xf32>
    %96 = arith.mulf %95, %94 : vector<32x64xf32>
    %cst_32 = arith.constant 4.471500e-02 : f32
    %97 = vector.broadcast %cst_32 : f32 to vector<32x64xf32>
    %98 = arith.mulf %97, %94 : vector<32x64xf32>
    %99 = arith.mulf %98, %94 : vector<32x64xf32>
    %100 = arith.mulf %99, %94 : vector<32x64xf32>
    %101 = arith.addf %94, %100 : vector<32x64xf32>
    %cst_33 = arith.constant 0.797884583 : f32
    %102 = vector.broadcast %cst_33 : f32 to vector<32x64xf32>
    %103 = arith.mulf %102, %101 : vector<32x64xf32>
    %104 = math.tanh %103 : vector<32x64xf32>
    %cst_34 = arith.constant 1.000000e+00 : f32
    %105 = vector.broadcast %cst_34 : f32 to vector<32x64xf32>
    %106 = arith.addf %105, %104 : vector<32x64xf32>
    %107 = arith.mulf %96, %106 : vector<32x64xf32>
    %c256 = arith.constant 256 : index
    %c0_35 = arith.constant 0 : index
    %108 = vector.load %arg2[%c256, %c0_35] : memref<664x128xf32, #tpu.memory_space<vmem>>, vector<64x128xf32>
    %109 = vector.extract_strided_slice %108 {offsets = [0, 0], sizes = [64, 32], strides = [1, 1]} : vector<64x128xf32> to vector<64x32xf32>
    %cst_36 = arith.constant dense<0.000000e+00> : vector<32x32xf32>
    %110 = tpu.matmul %107, %109, %cst_36 {dimension_numbers = #tpu.dot_dimension_numbers<[1], [0], [0], [1], [0, 0, 1, 1], [], []>} : vector<32x64xf32>, vector<64x32xf32>, vector<32x32xf32> -> vector<32x32xf32>
    %111 = arith.addf %61, %110 : vector<32x32xf32>
    %c320 = arith.constant 320 : index
    %c0_37 = arith.constant 0 : index
    %112 = vector.load %arg2[%c320, %c0_37] : memref<664x128xf32, #tpu.memory_space<vmem>>, vector<1x128xf32>
    %113 = vector.extract_strided_slice %112 {offsets = [0, 0], sizes = [1, 32], strides = [1, 1]} : vector<1x128xf32> to vector<1x32xf32>
    %114 = vector.broadcast %113 : vector<1x32xf32> to vector<32x32xf32>
    %115 = arith.addf %111, %114 : vector<32x32xf32>
    %c328 = arith.constant 328 : index
    %c0_38 = arith.constant 0 : index
    %116 = vector.load %arg2[%c328, %c0_38] : memref<664x128xf32, #tpu.memory_space<vmem>>, vector<1x128xf32>
    %117 = vector.extract_strided_slice %116 {offsets = [0, 0], sizes = [1, 32], strides = [1, 1]} : vector<1x128xf32> to vector<1x32xf32>
    %c336 = arith.constant 336 : index
    %c0_39 = arith.constant 0 : index
    %118 = vector.load %arg2[%c336, %c0_39] : memref<664x128xf32, #tpu.memory_space<vmem>>, vector<1x128xf32>
    %119 = vector.extract_strided_slice %118 {offsets = [0, 0], sizes = [1, 32], strides = [1, 1]} : vector<1x128xf32> to vector<1x32xf32>
    %cst_40 = arith.constant dense<0.000000e+00> : vector<32xf32>
    %120 = vector.multi_reduction <add>, %115, %cst_40 [1] : vector<32x32xf32> to vector<32xf32>
    %121 = vector.shape_cast %120 : vector<32xf32> to vector<32x1xf32>
    %cst_41 = arith.constant 3.200000e+01 : f32
    %122 = vector.broadcast %cst_41 : f32 to vector<32x1xf32>
    %123 = arith.divf %121, %122 : vector<32x1xf32>
    %124 = vector.broadcast %123 : vector<32x1xf32> to vector<32x32xf32>
    %125 = arith.subf %115, %124 : vector<32x32xf32>
    %126 = arith.mulf %125, %125 : vector<32x32xf32>
    %cst_42 = arith.constant dense<0.000000e+00> : vector<32xf32>
    %127 = vector.multi_reduction <add>, %126, %cst_42 [1] : vector<32x32xf32> to vector<32xf32>
    %128 = vector.shape_cast %127 : vector<32xf32> to vector<32x1xf32>
    %cst_43 = arith.constant 3.200000e+01 : f32
    %129 = vector.broadcast %cst_43 : f32 to vector<32x1xf32>
    %130 = arith.divf %128, %129 : vector<32x1xf32>
    %131 = vector.broadcast %123 : vector<32x1xf32> to vector<32x32xf32>
    %132 = arith.subf %115, %131 : vector<32x32xf32>
    %cst_44 = arith.constant 9.99999974E-6 : f32
    %133 = vector.broadcast %cst_44 : f32 to vector<32x1xf32>
    %134 = arith.addf %130, %133 : vector<32x1xf32>
    %135 = math.rsqrt %134 : vector<32x1xf32>
    %136 = vector.broadcast %135 : vector<32x1xf32> to vector<32x32xf32>
    %137 = arith.mulf %132, %136 : vector<32x32xf32>
    %138 = vector.broadcast %117 : vector<1x32xf32> to vector<32x32xf32>
    %139 = arith.mulf %137, %138 : vector<32x32xf32>
    %140 = vector.broadcast %119 : vector<1x32xf32> to vector<32x32xf32>
    %141 = arith.addf %139, %140 : vector<32x32xf32>
    %c344 = arith.constant 344 : index
    %c0_45 = arith.constant 0 : index
    %142 = vector.load %arg2[%c344, %c0_45] : memref<664x128xf32, #tpu.memory_space<vmem>>, vector<32x128xf32>
    %143 = vector.extract_strided_slice %142 {offsets = [0, 0], sizes = [32, 32], strides = [1, 1]} : vector<32x128xf32> to vector<32x32xf32>
    %cst_46 = arith.constant dense<0.000000e+00> : vector<32x32xf32>
    %144 = tpu.matmul %143, %141, %cst_46 {dimension_numbers = #tpu.dot_dimension_numbers<[1], [0], [0], [1], [0, 0, 1, 1], [], []>} : vector<32x32xf32>, vector<32x32xf32>, vector<32x32xf32> -> vector<32x32xf32>
    %c376 = arith.constant 376 : index
    %c0_47 = arith.constant 0 : index
    %145 = vector.load %arg2[%c376, %c0_47] : memref<664x128xf32, #tpu.memory_space<vmem>>, vector<32x128xf32>
    %146 = vector.extract_strided_slice %145 {offsets = [0, 0], sizes = [32, 1], strides = [1, 1]} : vector<32x128xf32> to vector<32x1xf32>
    %147 = vector.broadcast %146 : vector<32x1xf32> to vector<32x32xf32>
    %148 = arith.addf %144, %147 : vector<32x32xf32>
    %cst_48 = arith.constant 5.000000e-01 : f32
    %149 = vector.broadcast %cst_48 : f32 to vector<32x32xf32>
    %150 = arith.mulf %149, %148 : vector<32x32xf32>
    %cst_49 = arith.constant 4.471500e-02 : f32
    %151 = vector.broadcast %cst_49 : f32 to vector<32x32xf32>
    %152 = arith.mulf %151, %148 : vector<32x32xf32>
    %153 = arith.mulf %152, %148 : vector<32x32xf32>
    %154 = arith.mulf %153, %148 : vector<32x32xf32>
    %155 = arith.addf %148, %154 : vector<32x32xf32>
    %cst_50 = arith.constant 0.797884583 : f32
    %156 = vector.broadcast %cst_50 : f32 to vector<32x32xf32>
    %157 = arith.mulf %156, %155 : vector<32x32xf32>
    %158 = math.tanh %157 : vector<32x32xf32>
    %cst_51 = arith.constant 1.000000e+00 : f32
    %159 = vector.broadcast %cst_51 : f32 to vector<32x32xf32>
    %160 = arith.addf %159, %158 : vector<32x32xf32>
    %161 = arith.mulf %150, %160 : vector<32x32xf32>
    %c408 = arith.constant 408 : index
    %c0_52 = arith.constant 0 : index
    %162 = vector.load %arg2[%c408, %c0_52] : memref<664x128xf32, #tpu.memory_space<vmem>>, vector<32x128xf32>
    %163 = vector.extract_strided_slice %162 {offsets = [0, 0], sizes = [32, 32], strides = [1, 1]} : vector<32x128xf32> to vector<32x32xf32>
    %cst_53 = arith.constant dense<0.000000e+00> : vector<32x32xf32>
    %164 = tpu.matmul %163, %161, %cst_53 {dimension_numbers = #tpu.dot_dimension_numbers<[1], [0], [0], [1], [0, 0, 1, 1], [], []>} : vector<32x32xf32>, vector<32x32xf32>, vector<32x32xf32> -> vector<32x32xf32>
    %165 = arith.addf %115, %164 : vector<32x32xf32>
    %c440 = arith.constant 440 : index
    %c0_54 = arith.constant 0 : index
    %166 = vector.load %arg2[%c440, %c0_54] : memref<664x128xf32, #tpu.memory_space<vmem>>, vector<32x128xf32>
    %167 = vector.extract_strided_slice %166 {offsets = [0, 0], sizes = [32, 1], strides = [1, 1]} : vector<32x128xf32> to vector<32x1xf32>
    %168 = vector.broadcast %167 : vector<32x1xf32> to vector<32x32xf32>
    %169 = arith.addf %165, %168 : vector<32x32xf32>
    %c472 = arith.constant 472 : index
    %c0_55 = arith.constant 0 : index
    %170 = vector.load %arg2[%c472, %c0_55] : memref<664x128xf32, #tpu.memory_space<vmem>>, vector<1x128xf32>
    %171 = vector.extract_strided_slice %170 {offsets = [0, 0], sizes = [1, 32], strides = [1, 1]} : vector<1x128xf32> to vector<1x32xf32>
    %c480 = arith.constant 480 : index
    %c0_56 = arith.constant 0 : index
    %172 = vector.load %arg2[%c480, %c0_56] : memref<664x128xf32, #tpu.memory_space<vmem>>, vector<1x128xf32>
    %173 = vector.extract_strided_slice %172 {offsets = [0, 0], sizes = [1, 32], strides = [1, 1]} : vector<1x128xf32> to vector<1x32xf32>
    %cst_57 = arith.constant dense<0.000000e+00> : vector<32xf32>
    %174 = vector.multi_reduction <add>, %169, %cst_57 [1] : vector<32x32xf32> to vector<32xf32>
    %175 = vector.shape_cast %174 : vector<32xf32> to vector<32x1xf32>
    %cst_58 = arith.constant 3.200000e+01 : f32
    %176 = vector.broadcast %cst_58 : f32 to vector<32x1xf32>
    %177 = arith.divf %175, %176 : vector<32x1xf32>
    %178 = vector.broadcast %177 : vector<32x1xf32> to vector<32x32xf32>
    %179 = arith.subf %169, %178 : vector<32x32xf32>
    %180 = arith.mulf %179, %179 : vector<32x32xf32>
    %cst_59 = arith.constant dense<0.000000e+00> : vector<32xf32>
    %181 = vector.multi_reduction <add>, %180, %cst_59 [1] : vector<32x32xf32> to vector<32xf32>
    %182 = vector.shape_cast %181 : vector<32xf32> to vector<32x1xf32>
    %cst_60 = arith.constant 3.200000e+01 : f32
    %183 = vector.broadcast %cst_60 : f32 to vector<32x1xf32>
    %184 = arith.divf %182, %183 : vector<32x1xf32>
    %185 = vector.broadcast %177 : vector<32x1xf32> to vector<32x32xf32>
    %186 = arith.subf %169, %185 : vector<32x32xf32>
    %cst_61 = arith.constant 9.99999974E-6 : f32
    %187 = vector.broadcast %cst_61 : f32 to vector<32x1xf32>
    %188 = arith.addf %184, %187 : vector<32x1xf32>
    %189 = math.rsqrt %188 : vector<32x1xf32>
    %190 = vector.broadcast %189 : vector<32x1xf32> to vector<32x32xf32>
    %191 = arith.mulf %186, %190 : vector<32x32xf32>
    %192 = vector.broadcast %171 : vector<1x32xf32> to vector<32x32xf32>
    %193 = arith.mulf %191, %192 : vector<32x32xf32>
    %194 = vector.broadcast %173 : vector<1x32xf32> to vector<32x32xf32>
    %195 = arith.addf %193, %194 : vector<32x32xf32>
    %c488 = arith.constant 488 : index
    %c0_62 = arith.constant 0 : index
    %196 = vector.load %arg2[%c488, %c0_62] : memref<664x128xf32, #tpu.memory_space<vmem>>, vector<32x128xf32>
    %197 = vector.extract_strided_slice %196 {offsets = [0, 0], sizes = [32, 64], strides = [1, 1]} : vector<32x128xf32> to vector<32x64xf32>
    %cst_63 = arith.constant dense<0.000000e+00> : vector<32x64xf32>
    %198 = tpu.matmul %195, %197, %cst_63 {dimension_numbers = #tpu.dot_dimension_numbers<[1], [0], [0], [1], [0, 0, 1, 1], [], []>} : vector<32x32xf32>, vector<32x64xf32>, vector<32x64xf32> -> vector<32x64xf32>
    %c520 = arith.constant 520 : index
    %c0_64 = arith.constant 0 : index
    %199 = vector.load %arg2[%c520, %c0_64] : memref<664x128xf32, #tpu.memory_space<vmem>>, vector<1x128xf32>
    %200 = vector.extract_strided_slice %199 {offsets = [0, 0], sizes = [1, 64], strides = [1, 1]} : vector<1x128xf32> to vector<1x64xf32>
    %201 = vector.broadcast %200 : vector<1x64xf32> to vector<32x64xf32>
    %202 = arith.addf %198, %201 : vector<32x64xf32>
    %cst_65 = arith.constant 5.000000e-01 : f32
    %203 = vector.broadcast %cst_65 : f32 to vector<32x64xf32>
    %204 = arith.mulf %203, %202 : vector<32x64xf32>
    %cst_66 = arith.constant 4.471500e-02 : f32
    %205 = vector.broadcast %cst_66 : f32 to vector<32x64xf32>
    %206 = arith.mulf %205, %202 : vector<32x64xf32>
    %207 = arith.mulf %206, %202 : vector<32x64xf32>
    %208 = arith.mulf %207, %202 : vector<32x64xf32>
    %209 = arith.addf %202, %208 : vector<32x64xf32>
    %cst_67 = arith.constant 0.797884583 : f32
    %210 = vector.broadcast %cst_67 : f32 to vector<32x64xf32>
    %211 = arith.mulf %210, %209 : vector<32x64xf32>
    %212 = math.tanh %211 : vector<32x64xf32>
    %cst_68 = arith.constant 1.000000e+00 : f32
    %213 = vector.broadcast %cst_68 : f32 to vector<32x64xf32>
    %214 = arith.addf %213, %212 : vector<32x64xf32>
    %215 = arith.mulf %204, %214 : vector<32x64xf32>
    %c528 = arith.constant 528 : index
    %c0_69 = arith.constant 0 : index
    %216 = vector.load %arg2[%c528, %c0_69] : memref<664x128xf32, #tpu.memory_space<vmem>>, vector<64x128xf32>
    %217 = vector.extract_strided_slice %216 {offsets = [0, 0], sizes = [64, 32], strides = [1, 1]} : vector<64x128xf32> to vector<64x32xf32>
    %cst_70 = arith.constant dense<0.000000e+00> : vector<32x32xf32>
    %218 = tpu.matmul %215, %217, %cst_70 {dimension_numbers = #tpu.dot_dimension_numbers<[1], [0], [0], [1], [0, 0, 1, 1], [], []>} : vector<32x64xf32>, vector<64x32xf32>, vector<32x32xf32> -> vector<32x32xf32>
    %219 = arith.addf %169, %218 : vector<32x32xf32>
    %c592 = arith.constant 592 : index
    %c0_71 = arith.constant 0 : index
    %220 = vector.load %arg2[%c592, %c0_71] : memref<664x128xf32, #tpu.memory_space<vmem>>, vector<1x128xf32>
    %221 = vector.extract_strided_slice %220 {offsets = [0, 0], sizes = [1, 32], strides = [1, 1]} : vector<1x128xf32> to vector<1x32xf32>
    %222 = vector.broadcast %221 : vector<1x32xf32> to vector<32x32xf32>
    %223 = arith.addf %219, %222 : vector<32x32xf32>
    %c600 = arith.constant 600 : index
    %c0_72 = arith.constant 0 : index
    %224 = vector.load %arg2[%c600, %c0_72] : memref<664x128xf32, #tpu.memory_space<vmem>>, vector<1x128xf32>
    %225 = vector.extract_strided_slice %224 {offsets = [0, 0], sizes = [1, 32], strides = [1, 1]} : vector<1x128xf32> to vector<1x32xf32>
    %c608 = arith.constant 608 : index
    %c0_73 = arith.constant 0 : index
    %226 = vector.load %arg2[%c608, %c0_73] : memref<664x128xf32, #tpu.memory_space<vmem>>, vector<1x128xf32>
    %227 = vector.extract_strided_slice %226 {offsets = [0, 0], sizes = [1, 32], strides = [1, 1]} : vector<1x128xf32> to vector<1x32xf32>
    %cst_74 = arith.constant dense<0.000000e+00> : vector<32xf32>
    %228 = vector.multi_reduction <add>, %223, %cst_74 [1] : vector<32x32xf32> to vector<32xf32>
    %229 = vector.shape_cast %228 : vector<32xf32> to vector<32x1xf32>
    %cst_75 = arith.constant 3.200000e+01 : f32
    %230 = vector.broadcast %cst_75 : f32 to vector<32x1xf32>
    %231 = arith.divf %229, %230 : vector<32x1xf32>
    %232 = vector.broadcast %231 : vector<32x1xf32> to vector<32x32xf32>
    %233 = arith.subf %223, %232 : vector<32x32xf32>
    %234 = arith.mulf %233, %233 : vector<32x32xf32>
    %cst_76 = arith.constant dense<0.000000e+00> : vector<32xf32>
    %235 = vector.multi_reduction <add>, %234, %cst_76 [1] : vector<32x32xf32> to vector<32xf32>
    %236 = vector.shape_cast %235 : vector<32xf32> to vector<32x1xf32>
    %cst_77 = arith.constant 3.200000e+01 : f32
    %237 = vector.broadcast %cst_77 : f32 to vector<32x1xf32>
    %238 = arith.divf %236, %237 : vector<32x1xf32>
    %239 = vector.broadcast %231 : vector<32x1xf32> to vector<32x32xf32>
    %240 = arith.subf %223, %239 : vector<32x32xf32>
    %cst_78 = arith.constant 9.99999974E-6 : f32
    %241 = vector.broadcast %cst_78 : f32 to vector<32x1xf32>
    %242 = arith.addf %238, %241 : vector<32x1xf32>
    %243 = math.rsqrt %242 : vector<32x1xf32>
    %244 = vector.broadcast %243 : vector<32x1xf32> to vector<32x32xf32>
    %245 = arith.mulf %240, %244 : vector<32x32xf32>
    %246 = vector.broadcast %225 : vector<1x32xf32> to vector<32x32xf32>
    %247 = arith.mulf %245, %246 : vector<32x32xf32>
    %248 = vector.broadcast %227 : vector<1x32xf32> to vector<32x32xf32>
    %249 = arith.addf %247, %248 : vector<32x32xf32>
    %c616 = arith.constant 616 : index
    %c0_79 = arith.constant 0 : index
    %250 = vector.load %arg2[%c616, %c0_79] : memref<664x128xf32, #tpu.memory_space<vmem>>, vector<2x128xf32>
    %251 = vector.extract_strided_slice %250 {offsets = [0, 0], sizes = [2, 32], strides = [1, 1]} : vector<2x128xf32> to vector<2x32xf32>
    %cst_80 = arith.constant dense<0.000000e+00> : vector<2x32xf32>
    %252 = tpu.matmul %251, %249, %cst_80 {dimension_numbers = #tpu.dot_dimension_numbers<[1], [0], [0], [1], [0, 0, 1, 1], [], []>} : vector<2x32xf32>, vector<32x32xf32>, vector<2x32xf32> -> vector<2x32xf32>
    %c624 = arith.constant 624 : index
    %c0_81 = arith.constant 0 : index
    %253 = vector.load %arg2[%c624, %c0_81] : memref<664x128xf32, #tpu.memory_space<vmem>>, vector<32x128xf32>
    %c656 = arith.constant 656 : index
    %c0_82 = arith.constant 0 : index
    %254 = vector.load %arg2[%c656, %c0_82] : memref<664x128xf32, #tpu.memory_space<vmem>>, vector<1x128xf32>
    %cst_83 = arith.constant dense<0.000000e+00> : vector<2x128xf32>
    %255 = tpu.matmul %252, %253, %cst_83 {dimension_numbers = #tpu.dot_dimension_numbers<[1], [0], [0], [1], [0, 0, 1, 1], [], []>} : vector<2x32xf32>, vector<32x128xf32>, vector<2x128xf32> -> vector<2x128xf32>
    %256 = vector.broadcast %254 : vector<1x128xf32> to vector<2x128xf32>
    %257 = arith.addf %255, %256 : vector<2x128xf32>
    %258 = vector.shape_cast %257 : vector<2x128xf32> to vector<1x2x128xf32>
    %c0_84 = arith.constant 0 : index
    %c0_85 = arith.constant 0 : index
    %c0_86 = arith.constant 0 : index
    %259 = vector.load %arg3[%c0_84, %c0_85, %c0_86] : memref<1x2x128xf32, #tpu.memory_space<vmem>>, vector<1x2x128xf32>
    tpu.vector_store %arg3[%c0_84, %c0_85, %c0_86], %258 {strides = array<i32>} : memref<1x2x128xf32, #tpu.memory_space<vmem>>, vector<1x2x128xf32>,
    return
  }
  func.func @transform_0(%arg0: i32) -> (i32, i32) {
    %c0_i32 = arith.constant 0 : i32
    %c0_i32_0 = arith.constant 0 : i32
    return %arg0, %c0_i32 : i32, i32
  }
  func.func @transform_1(%arg0: i32) -> (i32, i32) {
    %c0_i32 = arith.constant 0 : i32
    %c0_i32_0 = arith.constant 0 : i32
    %c0_i32_1 = arith.constant 0 : i32
    return %c0_i32, %c0_i32_0 : i32, i32
  }
  func.func @transform_2(%arg0: i32) -> (i32, i32, i32) {
    %c0_i32 = arith.constant 0 : i32
    %c0_i32_0 = arith.constant 0 : i32
    %c0_i32_1 = arith.constant 0 : i32
    return %arg0, %c0_i32, %c0_i32_0 : i32, i32, i32
  }
}

</mosaic_0001>

<llo_original>
// kernel: _forward.1
$region0: #{_forward.1}
  #allocation0 [shape = 'u32[]', space=smem, size = 0x4, offset = 0x4, fixed_abs, tag = 'smem constant byte address 0x4 - core index']
  #allocation1 [shape = 'u32[144,128]{1,0:T(1,128)}', space=vmem, size = 0x12000, scoped, tag = 'internal scratch']
  %s0 = inlined_call_operand.vmem [shape: f32[32,48], index: 0, kind: input, shape index: {}]
  %s1 = inlined_call_operand.vmem [shape: f32[664,128], index: 1, kind: input, shape index: {}]
  %s2 = inlined_call_operand.hbm [shape: f32[1,2,128], index: 2, kind: output, shape index: {}]
  %s3 = sld [smem:[#allocation0]]
  $region18: #{_forward.1} parent=0
    _
  %s5 = ssub.s32 1, %s3
  %s6 = scalar_select 0, %s5, %s3
  $region1: #{_forward.1} parent=0
    #allocation2 [shape = 'u8[1024]{0}', space=vmem, size = 0x400, scoped, tag = 'output window, operand 0, single buffered']
    #allocation3 [shape = 's32[1]{0}', space=sflag, size = 0x4, scoped, tag = 'scoped memory for _forward.1']
    %7 = vsyncpa [#allocation3], 0
    // Predicated region
    $region2: #{_forward.1} parent=1 // pred_check
      _
    $region3: #{_forward.1} parent=1 // pred_check_branch
      %9 = sbr.rel (0) target = $region5
    $region4: #{_forward.1} parent=1 // pred_region
      _
    $region5: #{_forward.1} parent=1 // pred_fallthru
      _
    // Predicated region
    $region6: #{_forward.1} parent=1 // pred_check
      _
    $region7: #{_forward.1} parent=1 // pred_check_branch
      %11 = sbr.rel (0) target = $region9
    $region8: #{_forward.1} parent=1 // pred_region
      _
    $region9: #{_forward.1} parent=1 // pred_fallthru
      _
    %v12 = vld [vmem:[%s0] sm:$0xff]
    %v13 = vld [vmem:[%s0 + $0x8] sm:$0xff]
    %v14 = vld [vmem:[%s0 + $0x10] sm:$0xff]
    %v15 = vld [vmem:[%s0 + $0x18] sm:$0xff]
    %v16 = vld [vmem:[%s1] sm:$0xff]
    %v17 = vld [vmem:[%s1 + $0x8] sm:$0xff]
    %v18 = vld [vmem:[%s1 + $0x10] sm:$0xff]
    %v19 = vld [vmem:[%s1 + $0x18] sm:$0xff]
    %v20 = vld [vmem:[%s1 + $0x20] sm:$0xff]
    %v21 = vld [vmem:[%s1 + $0x28] sm:$0xff]
    %v22 = vld [vmem:[%s1 + $0x30] sm:$0x1]
    %v23 = vlaneseq
    %v24 = vshrl.u32 %v23, 7
    %v25 = vsub.s32 0, %v24
    %v26 = vrot.slane %v22, %v25
    %vm27 = vcmask 392192
    %v29 = vsel %vm27, %v12, 0
    %v32 = vsel %vm27, %v13, 0
    %v35 = vsel %vm27, %v14, 0
    %v38 = vsel %vm27, %v15, 0
    %40 = vmatprep.subr.mxu0 0.0
    %41 = vmatpush1.msra.mxu0 0.0
    %42 = vmatprep.subr.mxu0 0.0
    %43 = vmatpush1.msra.mxu0 0.0
    %44 = vmatprep.subr.mxu0 0.0
    %45 = vmatpush1.msra.mxu0 0.0
    %46 = vmatprep.subr.mxu0 0.0
    %47 = vmatpush1.msra.mxu0 0.0
    %48 = vmatprep.subr.mxu0 0.0
    %49 = vmatpush1.msra.mxu0 0.0
    %50 = vmatprep.subr.mxu0 0.0
    %51 = vmatpush1.msra.mxu0 0.0
    %52 = vmatprep.subr.mxu0 0.0
    %53 = vmatpush1.msra.mxu0 0.0
    %54 = vmatprep.subr.mxu0 0.0
    %55 = vmatpush1.msra.mxu0 0.0
    %56 = vmatprep.subr.mxu0 0.0
    %57 = vmatpush1.msra.mxu0 0.0
    %58 = vmatprep.subr.mxu0 0.0
    %59 = vmatpush1.msra.mxu0 0.0
    %60 = vmatprep.subr.mxu0 0.0
    %61 = vmatpush1.msra.mxu0 %v21
    %62 = vmatprep.subr.mxu0 0.0
    %63 = vmatpush1.msra.mxu0 %v20
    %64 = vmatprep.subr.mxu0 0.0
    %65 = vmatpush1.msra.mxu0 %v19
    %66 = vmatprep.subr.mxu0 0.0
    %67 = vmatpush1.msra.mxu0 %v18
    %68 = vmatprep.subr.mxu0 0.0
    %69 = vmatpush1.msra.mxu0 %v17
    %70 = vmatprep.subr.mxu0 0.0
    %71 = vmatpush1.msra.mxu0 %v16
    %72 = vmatprep.subr.mxu0 0.0
    %73 = vmatpush2.msra.mxu0 0.0
    %74 = vmatprep.subr.mxu0 0.0
    %75 = vmatpush2.msra.mxu0 0.0
    %76 = vmatprep.subr.mxu0 0.0
    %77 = vmatpush2.msra.mxu0 0.0
    %78 = vmatprep.subr.mxu0 0.0
    %79 = vmatpush2.msra.mxu0 0.0
    %80 = vmatprep.subr.mxu0 0.0
    %81 = vmatpush2.msra.mxu0 0.0
    %82 = vmatprep.subr.mxu0 0.0
    %83 = vmatpush2.msra.mxu0 0.0
    %84 = vmatprep.subr.mxu0 0.0
    %85 = vmatpush2.msra.mxu0 0.0
    %86 = vmatprep.subr.mxu0 0.0
    %87 = vmatpush2.msra.mxu0 0.0
    %88 = vmatprep.subr.mxu0 0.0
    %89 = vmatpush2.msra.mxu0 0.0
    %90 = vmatprep.subr.mxu0 0.0
    %91 = vmatpush2.msra.mxu0 0.0
    %92 = vmatprep.subr.mxu0 0.0
    %93 = vmatpush2.msra.mxu0 0.0
    %94 = vmatprep.subr.mxu0 0.0
    %95 = vmatpush2.msra.mxu0 0.0
    %96 = vmatprep.subr.mxu0 0.0
    %97 = vmatpush2.msra.mxu0 0.0
    %98 = vmatprep.subr.mxu0 0.0
    %99 = vmatpush2.msra.mxu0 0.0
    %100 = vmatprep.subr.mxu0 0.0
    %101 = vmatpush2.msra.mxu0 0.0
    %102 = vmatprep.subr.mxu0 0.0
    %103 = vmatpush2.msra.mxu0 0.0
    %104 = vmatprep.mubr.f32.mxu0 0.0
    %105 = vmatmul.mubr.f32.gmra.mxu0 %v29
    %v106 = vpop.f32.mrf.mxu0
    %v107 = vadd.f32 %v26, %v106
    %v108 = vpop.f32.mrf.mxu0
    %109 = vmatprep.mubr.f32.mxu0 0.0
    %110 = vmatmul.mubr.f32.gmra.mxu0 %v32
    %v111 = vpop.f32.mrf.mxu0
    %v112 = vadd.f32 %v26, %v111
    %v113 = vpop.f32.mrf.mxu0
    %114 = vmatprep.mubr.f32.mxu0 0.0
    %115 = vmatmul.mubr.f32.gmra.mxu0 %v35
    %v116 = vpop.f32.mrf.mxu0
    %v117 = vadd.f32 %v26, %v116
    %v118 = vpop.f32.mrf.mxu0
    %119 = vmatprep.mubr.f32.mxu0 0.0
    %120 = vmatmul.mubr.f32.gmra.mxu0 %v38
    %v121 = vpop.f32.mrf.mxu0
    %v122 = vadd.f32 %v26, %v121
    %v123 = vpop.f32.mrf.mxu0
    %124 = vdwg.mxu0
    %v125 = vld [vmem:[%s1 + $0x38] sm:$0x1]
    %v126 = vld [vmem:[%s1 + $0x40] sm:$0x1]
    %vm127 = vcmask 261120
    %v128 = vsel %vm127, %v107, 0.0
    %129 = vadd.xlane.f32.xlu0 %v128
    %v130 = vpop.xlane.xlu0 %129
    %v131 = vsel %vm127, %v112, 0.0
    %132 = vadd.xlane.f32.xlu0 %v131
    %v133 = vpop.xlane.xlu0 %132
    %v134 = vsel %vm127, %v117, 0.0
    %135 = vadd.xlane.f32.xlu0 %v134
    %v136 = vpop.xlane.xlu0 %135
    %v137 = vsel %vm127, %v122, 0.0
    %138 = vadd.xlane.f32.xlu0 %v137
    %v139 = vpop.xlane.xlu0 %138
    %v140 = vrcp.pop 32.0
    %v141 = vmul.f32 %v130, %v140
    %v142 = vmul.f32 %v133, %v140
    %v143 = vmul.f32 %v136, %v140
    %v144 = vmul.f32 %v139, %v140
    %v145 = vsub.f32 %v107, %v141
    %v146 = vsub.f32 %v112, %v142
    %v147 = vsub.f32 %v117, %v143
    %v148 = vsub.f32 %v122, %v144
    %v149 = vmul.f32 %v145, %v145
    %v150 = vmul.f32 %v146, %v146
    %v151 = vmul.f32 %v147, %v147
    %v152 = vmul.f32 %v148, %v148
    %v153 = vsel %vm127, %v149, 0.0
    %154 = vadd.xlane.f32.xlu0 %v153
    %v155 = vpop.xlane.xlu0 %154
    %v156 = vsel %vm127, %v150, 0.0
    %157 = vadd.xlane.f32.xlu0 %v156
    %v158 = vpop.xlane.xlu0 %157
    %v159 = vsel %vm127, %v151, 0.0
    %160 = vadd.xlane.f32.xlu0 %v159
    %v161 = vpop.xlane.xlu0 %160
    %v162 = vsel %vm127, %v152, 0.0
    %163 = vadd.xlane.f32.xlu0 %v162
    %v164 = vpop.xlane.xlu0 %163
    %v165 = vmul.f32 %v155, %v140
    %v166 = vmul.f32 %v158, %v140
    %v167 = vmul.f32 %v161, %v140
    %v168 = vmul.f32 %v164, %v140
    %v169 = vadd.f32 %v165, 1e-05
    %v170 = vadd.f32 %v166, 1e-05
    %v171 = vadd.f32 %v167, 1e-05
    %v172 = vadd.f32 %v168, 1e-05
    %v173 = vrsqrt.pop %v169
    %v174 = vrsqrt.pop %v170
    %v175 = vrsqrt.pop %v171
    %v176 = vrsqrt.pop %v172
    %v177 = vmul.f32 %v145, %v173
    %v178 = vmul.f32 %v146, %v174
    %v179 = vmul.f32 %v147, %v175
    %v180 = vmul.f32 %v148, %v176
    %v181 = vlaneseq
    %v182 = vshrl.u32 %v181, 7
    %v183 = vsub.s32 0, %v182
    %v184 = vrot.slane %v125, %v183
    %v185 = vmul.f32 %v177, %v184
    %v186 = vmul.f32 %v178, %v184
    %v187 = vmul.f32 %v179, %v184
    %v188 = vmul.f32 %v180, %v184
    %v189 = vlaneseq
    %v190 = vshrl.u32 %v189, 7
    %v191 = vsub.s32 0, %v190
    %v192 = vrot.slane %v126, %v191
    %v193 = vadd.f32 %v185, %v192
    %v194 = vadd.f32 %v186, %v192
    %v195 = vadd.f32 %v187, %v192
    %v196 = vadd.f32 %v188, %v192
    %v197 = vld [vmem:[%s1 + $0x48] sm:$0xff]
    %v198 = vld [vmem:[%s1 + $0x50] sm:$0xff]
    %v199 = vld [vmem:[%s1 + $0x58] sm:$0xff]
    %v200 = vld [vmem:[%s1 + $0x60] sm:$0xff]
    %v201 = vld [vmem:[%s1 + $0x68] sm:$0xff]
    %v202 = vld [vmem:[%s1 + $0x70] sm:$0xff]
    %v203 = vld [vmem:[%s1 + $0x78] sm:$0xff]
    %v204 = vld [vmem:[%s1 + $0x80] sm:$0xff]
    %206 = vset.pattern.permute.xlu0 0
    %207 = vperm.xlu0 %206, %v201
    %v208 = vpop.permute.xlu0 %207
    %211 = vset.pattern.permute.xlu0 0
    %212 = vperm.xlu0 %211, %v202
    %v213 = vpop.permute.xlu0 %212
    %216 = vset.pattern.permute.xlu0 0
    %217 = vperm.xlu0 %216, %v203
    %v218 = vpop.permute.xlu0 %217
    %221 = vset.pattern.permute.xlu0 0
    %222 = vperm.xlu0 %221, %v204
    %v223 = vpop.permute.xlu0 %222
    %v226 = vsel %vm127, %v197, 0
    %v229 = vsel %vm127, %v198, 0
    %v232 = vsel %vm127, %v199, 0
    %v235 = vsel %vm127, %v200, 0
    %237 = vmatprep.subr.mxu0 0.0
    %238 = vmatpush1.msra.mxu0 0.0
    %239 = vmatprep.subr.mxu0 0.0
    %240 = vmatpush1.msra.mxu0 0.0
    %241 = vmatprep.subr.mxu0 0.0
    %242 = vmatpush1.msra.mxu0 0.0
    %243 = vmatprep.subr.mxu0 0.0
    %244 = vmatpush1.msra.mxu0 0.0
    %245 = vmatprep.subr.mxu0 0.0
    %246 = vmatpush1.msra.mxu0 0.0
    %247 = vmatprep.subr.mxu0 0.0
    %248 = vmatpush1.msra.mxu0 0.0
    %249 = vmatprep.subr.mxu0 0.0
    %250 = vmatpush1.msra.mxu0 0.0
    %251 = vmatprep.subr.mxu0 0.0
    %252 = vmatpush1.msra.mxu0 0.0
    %253 = vmatprep.subr.mxu0 0.0
    %254 = vmatpush1.msra.mxu0 0.0
    %255 = vmatprep.subr.mxu0 0.0
    %256 = vmatpush1.msra.mxu0 0.0
    %257 = vmatprep.subr.mxu0 0.0
    %258 = vmatpush1.msra.mxu0 0.0
    %259 = vmatprep.subr.mxu0 0.0
    %260 = vmatpush1.msra.mxu0 0.0
    %261 = vmatprep.subr.mxu0 0.0
    %262 = vmatpush1.msra.mxu0 %v196
    %263 = vmatprep.subr.mxu0 0.0
    %264 = vmatpush1.msra.mxu0 %v195
    %265 = vmatprep.subr.mxu0 0.0
    %266 = vmatpush1.msra.mxu0 %v194
    %267 = vmatprep.subr.mxu0 0.0
    %268 = vmatpush1.msra.mxu0 %v193
    %269 = vmatprep.subr.mxu0 0.0
    %270 = vmatpush2.msra.mxu0 0.0
    %271 = vmatprep.subr.mxu0 0.0
    %272 = vmatpush2.msra.mxu0 0.0
    %273 = vmatprep.subr.mxu0 0.0
    %274 = vmatpush2.msra.mxu0 0.0
    %275 = vmatprep.subr.mxu0 0.0
    %276 = vmatpush2.msra.mxu0 0.0
    %277 = vmatprep.subr.mxu0 0.0
    %278 = vmatpush2.msra.mxu0 0.0
    %279 = vmatprep.subr.mxu0 0.0
    %280 = vmatpush2.msra.mxu0 0.0
    %281 = vmatprep.subr.mxu0 0.0
    %282 = vmatpush2.msra.mxu0 0.0
    %283 = vmatprep.subr.mxu0 0.0
    %284 = vmatpush2.msra.mxu0 0.0
    %285 = vmatprep.subr.mxu0 0.0
    %286 = vmatpush2.msra.mxu0 0.0
    %287 = vmatprep.subr.mxu0 0.0
    %288 = vmatpush2.msra.mxu0 0.0
    %289 = vmatprep.subr.mxu0 0.0
    %290 = vmatpush2.msra.mxu0 0.0
    %291 = vmatprep.subr.mxu0 0.0
    %292 = vmatpush2.msra.mxu0 0.0
    %293 = vmatprep.subr.mxu0 0.0
    %294 = vmatpush2.msra.mxu0 0.0
    %295 = vmatprep.subr.mxu0 0.0
    %296 = vmatpush2.msra.mxu0 0.0
    %297 = vmatprep.subr.mxu0 0.0
    %298 = vmatpush2.msra.mxu0 0.0
    %299 = vmatprep.subr.mxu0 0.0
    %300 = vmatpush2.msra.mxu0 0.0
    %301 = vmatprep.mubr.f32.mxu0 0.0
    %302 = vmatmul.mubr.f32.gmra.mxu0 %v226
    %v303 = vpop.f32.mrf.mxu0
    %v304 = vadd.f32 %v208, %v303
    %v305 = vpop.f32.mrf.mxu0
    %306 = vmatprep.mubr.f32.mxu0 0.0
    %307 = vmatmul.mubr.f32.gmra.mxu0 %v229
    %v308 = vpop.f32.mrf.mxu0
    %v309 = vadd.f32 %v213, %v308
    %v310 = vpop.f32.mrf.mxu0
    %311 = vmatprep.mubr.f32.mxu0 0.0
    %312 = vmatmul.mubr.f32.gmra.mxu0 %v232
    %v313 = vpop.f32.mrf.mxu0
    %v314 = vadd.f32 %v218, %v313
    %v315 = vpop.f32.mrf.mxu0
    %316 = vmatprep.mubr.f32.mxu0 0.0
    %317 = vmatmul.mubr.f32.gmra.mxu0 %v235
    %v318 = vpop.f32.mrf.mxu0
    %v319 = vadd.f32 %v223, %v318
    %v320 = vpop.f32.mrf.mxu0
    %321 = vdwg.mxu0
    %v322 = vmul.f32 %v304, 0.5
    %v323 = vmul.f32 %v309, 0.5
    %v324 = vmul.f32 %v314, 0.5
    %v325 = vmul.f32 %v319, 0.5
    %v326 = vmul.f32 %v304, 0.044715
    %v327 = vmul.f32 %v309, 0.044715
    %v328 = vmul.f32 %v314, 0.044715
    %v329 = vmul.f32 %v319, 0.044715
    %v330 = vmul.f32 %v326, %v304
    %v331 = vmul.f32 %v327, %v309
    %v332 = vmul.f32 %v328, %v314
    %v333 = vmul.f32 %v329, %v319
    %v334 = vmul.f32 %v330, %v304
    %v335 = vmul.f32 %v331, %v309
    %v336 = vmul.f32 %v332, %v314
    %v337 = vmul.f32 %v333, %v319
    %v338 = vadd.f32 %v304, %v334
    %v339 = vadd.f32 %v309, %v335
    %v340 = vadd.f32 %v314, %v336
    %v341 = vadd.f32 %v319, %v337
    %v342 = vmul.f32 %v338, 0.7978846
    %v343 = vmul.f32 %v339, 0.7978846
    %v344 = vmul.f32 %v340, 0.7978846
    %v345 = vmul.f32 %v341, 0.7978846
    %v346 = vtanh.pop %v342
    %v347 = vtanh.pop %v343
    %v348 = vtanh.pop %v344
    %v349 = vtanh.pop %v345
    %v350 = vadd.f32 %v346, 1.0
    %v351 = vadd.f32 %v347, 1.0
    %v352 = vadd.f32 %v348, 1.0
    %v353 = vadd.f32 %v349, 1.0
    %v354 = vmul.f32 %v322, %v350
    %v355 = vmul.f32 %v323, %v351
    %v356 = vmul.f32 %v324, %v352
    %v357 = vmul.f32 %v325, %v353
    %v358 = vld [vmem:[%s1 + $0x88] sm:$0xff]
    %v359 = vld [vmem:[%s1 + $0x90] sm:$0xff]
    %v360 = vld [vmem:[%s1 + $0x98] sm:$0xff]
    %v361 = vld [vmem:[%s1 + $0xa0] sm:$0xff]
    %v363 = vsel %vm127, %v358, 0
    %v366 = vsel %vm127, %v359, 0
    %v369 = vsel %vm127, %v360, 0
    %v372 = vsel %vm127, %v361, 0
    %374 = vmatprep.subr.mxu0 0.0
    %375 = vmatpush1.msra.mxu0 0.0
    %376 = vmatprep.subr.mxu0 0.0
    %377 = vmatpush1.msra.mxu0 0.0
    %378 = vmatprep.subr.mxu0 0.0
    %379 = vmatpush1.msra.mxu0 0.0
    %380 = vmatprep.subr.mxu0 0.0
    %381 = vmatpush1.msra.mxu0 0.0
    %382 = vmatprep.subr.mxu0 0.0
    %383 = vmatpush1.msra.mxu0 0.0
    %384 = vmatprep.subr.mxu0 0.0
    %385 = vmatpush1.msra.mxu0 0.0
    %386 = vmatprep.subr.mxu0 0.0
    %387 = vmatpush1.msra.mxu0 0.0
    %388 = vmatprep.subr.mxu0 0.0
    %389 = vmatpush1.msra.mxu0 0.0
    %390 = vmatprep.subr.mxu0 0.0
    %391 = vmatpush1.msra.mxu0 0.0
    %392 = vmatprep.subr.mxu0 0.0
    %393 = vmatpush1.msra.mxu0 0.0
    %394 = vmatprep.subr.mxu0 0.0
    %395 = vmatpush1.msra.mxu0 0.0
    %396 = vmatprep.subr.mxu0 0.0
    %397 = vmatpush1.msra.mxu0 0.0
    %398 = vmatprep.subr.mxu0 0.0
    %399 = vmatpush1.msra.mxu0 %v357
    %400 = vmatprep.subr.mxu0 0.0
    %401 = vmatpush1.msra.mxu0 %v356
    %402 = vmatprep.subr.mxu0 0.0
    %403 = vmatpush1.msra.mxu0 %v355
    %404 = vmatprep.subr.mxu0 0.0
    %405 = vmatpush1.msra.mxu0 %v354
    %406 = vmatprep.subr.mxu0 0.0
    %407 = vmatpush2.msra.mxu0 0.0
    %408 = vmatprep.subr.mxu0 0.0
    %409 = vmatpush2.msra.mxu0 0.0
    %410 = vmatprep.subr.mxu0 0.0
    %411 = vmatpush2.msra.mxu0 0.0
    %412 = vmatprep.subr.mxu0 0.0
    %413 = vmatpush2.msra.mxu0 0.0
    %414 = vmatprep.subr.mxu0 0.0
    %415 = vmatpush2.msra.mxu0 0.0
    %416 = vmatprep.subr.mxu0 0.0
    %417 = vmatpush2.msra.mxu0 0.0
    %418 = vmatprep.subr.mxu0 0.0
    %419 = vmatpush2.msra.mxu0 0.0
    %420 = vmatprep.subr.mxu0 0.0
    %421 = vmatpush2.msra.mxu0 0.0
    %422 = vmatprep.subr.mxu0 0.0
    %423 = vmatpush2.msra.mxu0 0.0
    %424 = vmatprep.subr.mxu0 0.0
    %425 = vmatpush2.msra.mxu0 0.0
    %426 = vmatprep.subr.mxu0 0.0
    %427 = vmatpush2.msra.mxu0 0.0
    %428 = vmatprep.subr.mxu0 0.0
    %429 = vmatpush2.msra.mxu0 0.0
    %430 = vmatprep.subr.mxu0 0.0
    %431 = vmatpush2.msra.mxu0 0.0
    %432 = vmatprep.subr.mxu0 0.0
    %433 = vmatpush2.msra.mxu0 0.0
    %434 = vmatprep.subr.mxu0 0.0
    %435 = vmatpush2.msra.mxu0 0.0
    %436 = vmatprep.subr.mxu0 0.0
    %437 = vmatpush2.msra.mxu0 0.0
    %438 = vmatprep.mubr.f32.mxu0 0.0
    %439 = vmatmul.mubr.f32.gmra.mxu0 %v363
    %v440 = vpop.f32.mrf.mxu0
    %v441 = vadd.f32 0.0, %v440
    %v442 = vpop.f32.mrf.mxu0
    %443 = vmatprep.mubr.f32.mxu0 0.0
    %444 = vmatmul.mubr.f32.gmra.mxu0 %v366
    %v445 = vpop.f32.mrf.mxu0
    %v446 = vadd.f32 0.0, %v445
    %v447 = vpop.f32.mrf.mxu0
    %448 = vmatprep.mubr.f32.mxu0 0.0
    %449 = vmatmul.mubr.f32.gmra.mxu0 %v369
    %v450 = vpop.f32.mrf.mxu0
    %v451 = vadd.f32 0.0, %v450
    %v452 = vpop.f32.mrf.mxu0
    %453 = vmatprep.mubr.f32.mxu0 0.0
    %454 = vmatmul.mubr.f32.gmra.mxu0 %v372
    %v455 = vpop.f32.mrf.mxu0
    %v456 = vadd.f32 0.0, %v455
    %v457 = vpop.f32.mrf.mxu0
    %458 = vdwg.mxu0
    %v459 = vadd.f32 %v107, %v441
    %v460 = vadd.f32 %v112, %v446
    %v461 = vadd.f32 %v117, %v451
    %v462 = vadd.f32 %v122, %v456
    %v463 = vld [vmem:[%s1 + $0xa8] sm:$0xff]
    %v464 = vld [vmem:[%s1 + $0xb0] sm:$0xff]
    %v465 = vld [vmem:[%s1 + $0xb8] sm:$0xff]
    %v466 = vld [vmem:[%s1 + $0xc0] sm:$0xff]
    %468 = vset.pattern.permute.xlu0 0
    %469 = vperm.xlu0 %468, %v463
    %v470 = vpop.permute.xlu0 %469
    %473 = vset.pattern.permute.xlu0 0
    %474 = vperm.xlu0 %473, %v464
    %v475 = vpop.permute.xlu0 %474
    %478 = vset.pattern.permute.xlu0 0
    %479 = vperm.xlu0 %478, %v465
    %v480 = vpop.permute.xlu0 %479
    %483 = vset.pattern.permute.xlu0 0
    %484 = vperm.xlu0 %483, %v466
    %v485 = vpop.permute.xlu0 %484
    %v487 = vadd.f32 %v459, %v470
    %v488 = vadd.f32 %v460, %v475
    %v489 = vadd.f32 %v461, %v480
    %v490 = vadd.f32 %v462, %v485
    %v491 = vld [vmem:[%s1 + $0xc8] sm:$0x1]
    %v492 = vld [vmem:[%s1 + $0xd0] sm:$0x1]
    %v493 = vsel %vm127, %v487, 0.0
    %494 = vadd.xlane.f32.xlu0 %v493
    %v495 = vpop.xlane.xlu0 %494
    %v496 = vsel %vm127, %v488, 0.0
    %497 = vadd.xlane.f32.xlu0 %v496
    %v498 = vpop.xlane.xlu0 %497
    %v499 = vsel %vm127, %v489, 0.0
    %500 = vadd.xlane.f32.xlu0 %v499
    %v501 = vpop.xlane.xlu0 %500
    %v502 = vsel %vm127, %v490, 0.0
    %503 = vadd.xlane.f32.xlu0 %v502
    %v504 = vpop.xlane.xlu0 %503
    %v505 = vmul.f32 %v495, %v140
    %v506 = vmul.f32 %v498, %v140
    %v507 = vmul.f32 %v501, %v140
    %v508 = vmul.f32 %v504, %v140
    %v509 = vsub.f32 %v487, %v505
    %v510 = vsub.f32 %v488, %v506
    %v511 = vsub.f32 %v489, %v507
    %v512 = vsub.f32 %v490, %v508
    %v513 = vmul.f32 %v509, %v509
    %v514 = vmul.f32 %v510, %v510
    %v515 = vmul.f32 %v511, %v511
    %v516 = vmul.f32 %v512, %v512
    %v517 = vsel %vm127, %v513, 0.0
    %518 = vadd.xlane.f32.xlu0 %v517
    %v519 = vpop.xlane.xlu0 %518
    %v520 = vsel %vm127, %v514, 0.0
    %521 = vadd.xlane.f32.xlu0 %v520
    %v522 = vpop.xlane.xlu0 %521
    %v523 = vsel %vm127, %v515, 0.0
    %524 = vadd.xlane.f32.xlu0 %v523
    %v525 = vpop.xlane.xlu0 %524
    %v526 = vsel %vm127, %v516, 0.0
    %527 = vadd.xlane.f32.xlu0 %v526
    %v528 = vpop.xlane.xlu0 %527
    %v529 = vmul.f32 %v519, %v140
    %v530 = vmul.f32 %v522, %v140
    %v531 = vmul.f32 %v525, %v140
    %v532 = vmul.f32 %v528, %v140
    %v533 = vadd.f32 %v529, 1e-05
    %v534 = vadd.f32 %v530, 1e-05
    %v535 = vadd.f32 %v531, 1e-05
    %v536 = vadd.f32 %v532, 1e-05
    %v537 = vrsqrt.pop %v533
    %v538 = vrsqrt.pop %v534
    %v539 = vrsqrt.pop %v535
    %v540 = vrsqrt.pop %v536
    %v541 = vmul.f32 %v509, %v537
    %v542 = vmul.f32 %v510, %v538
    %v543 = vmul.f32 %v511, %v539
    %v544 = vmul.f32 %v512, %v540
    %v545 = vlaneseq
    %v546 = vshrl.u32 %v545, 7
    %v547 = vsub.s32 0, %v546
    %v548 = vrot.slane %v491, %v547
    %v549 = vmul.f32 %v541, %v548
    %v550 = vmul.f32 %v542, %v548
    %v551 = vmul.f32 %v543, %v548
    %v552 = vmul.f32 %v544, %v548
    %v553 = vlaneseq
    %v554 = vshrl.u32 %v553, 7
    %v555 = vsub.s32 0, %v554
    %v556 = vrot.slane %v492, %v555
    %v557 = vadd.f32 %v549, %v556
    %v558 = vadd.f32 %v550, %v556
    %v559 = vadd.f32 %v551, %v556
    %v560 = vadd.f32 %v552, %v556
    %v561 = vld [vmem:[%s1 + $0xd8] sm:$0xff]
    %v562 = vld [vmem:[%s1 + $0xe0] sm:$0xff]
    %v563 = vld [vmem:[%s1 + $0xe8] sm:$0xff]
    %v564 = vld [vmem:[%s1 + $0xf0] sm:$0xff]
    %v565 = vld [vmem:[%s1 + $0xf8] sm:$0x1]
    %v566 = vlaneseq
    %v567 = vshrl.u32 %v566, 7
    %v568 = vsub.s32 0, %v567
    %v569 = vrot.slane %v565, %v568
    %v571 = vsel %vm127, %v557, 0
    %v574 = vsel %vm127, %v558, 0
    %v577 = vsel %vm127, %v559, 0
    %v580 = vsel %vm127, %v560, 0
    %582 = vmatprep.subr.mxu0 0.0
    %583 = vmatpush1.msra.mxu0 0.0
    %584 = vmatprep.subr.mxu0 0.0
    %585 = vmatpush1.msra.mxu0 0.0
    %586 = vmatprep.subr.mxu0 0.0
    %587 = vmatpush1.msra.mxu0 0.0
    %588 = vmatprep.subr.mxu0 0.0
    %589 = vmatpush1.msra.mxu0 0.0
    %590 = vmatprep.subr.mxu0 0.0
    %591 = vmatpush1.msra.mxu0 0.0
    %592 = vmatprep.subr.mxu0 0.0
    %593 = vmatpush1.msra.mxu0 0.0
    %594 = vmatprep.subr.mxu0 0.0
    %595 = vmatpush1.msra.mxu0 0.0
    %596 = vmatprep.subr.mxu0 0.0
    %597 = vmatpush1.msra.mxu0 0.0
    %598 = vmatprep.subr.mxu0 0.0
    %599 = vmatpush1.msra.mxu0 0.0
    %600 = vmatprep.subr.mxu0 0.0
    %601 = vmatpush1.msra.mxu0 0.0
    %602 = vmatprep.subr.mxu0 0.0
    %603 = vmatpush1.msra.mxu0 0.0
    %604 = vmatprep.subr.mxu0 0.0
    %605 = vmatpush1.msra.mxu0 0.0
    %606 = vmatprep.subr.mxu0 0.0
    %607 = vmatpush1.msra.mxu0 %v564
    %608 = vmatprep.subr.mxu0 0.0
    %609 = vmatpush1.msra.mxu0 %v563
    %610 = vmatprep.subr.mxu0 0.0
    %611 = vmatpush1.msra.mxu0 %v562
    %612 = vmatprep.subr.mxu0 0.0
    %613 = vmatpush1.msra.mxu0 %v561
    %614 = vmatprep.subr.mxu0 0.0
    %615 = vmatpush2.msra.mxu0 0.0
    %616 = vmatprep.subr.mxu0 0.0
    %617 = vmatpush2.msra.mxu0 0.0
    %618 = vmatprep.subr.mxu0 0.0
    %619 = vmatpush2.msra.mxu0 0.0
    %620 = vmatprep.subr.mxu0 0.0
    %621 = vmatpush2.msra.mxu0 0.0
    %622 = vmatprep.subr.mxu0 0.0
    %623 = vmatpush2.msra.mxu0 0.0
    %624 = vmatprep.subr.mxu0 0.0
    %625 = vmatpush2.msra.mxu0 0.0
    %626 = vmatprep.subr.mxu0 0.0
    %627 = vmatpush2.msra.mxu0 0.0
    %628 = vmatprep.subr.mxu0 0.0
    %629 = vmatpush2.msra.mxu0 0.0
    %630 = vmatprep.subr.mxu0 0.0
    %631 = vmatpush2.msra.mxu0 0.0
    %632 = vmatprep.subr.mxu0 0.0
    %633 = vmatpush2.msra.mxu0 0.0
    %634 = vmatprep.subr.mxu0 0.0
    %635 = vmatpush2.msra.mxu0 0.0
    %636 = vmatprep.subr.mxu0 0.0
    %637 = vmatpush2.msra.mxu0 0.0
    %638 = vmatprep.subr.mxu0 0.0
    %639 = vmatpush2.msra.mxu0 0.0
    %640 = vmatprep.subr.mxu0 0.0
    %641 = vmatpush2.msra.mxu0 0.0
    %642 = vmatprep.subr.mxu0 0.0
    %643 = vmatpush2.msra.mxu0 0.0
    %644 = vmatprep.subr.mxu0 0.0
    %645 = vmatpush2.msra.mxu0 0.0
    %646 = vmatprep.mubr.f32.mxu0 0.0
    %647 = vmatmul.mubr.f32.gmra.mxu0 %v571
    %v648 = vpop.f32.mrf.mxu0
    %v649 = vadd.f32 %v569, %v648
    %v650 = vpop.f32.mrf.mxu0
    %651 = vmatprep.mubr.f32.mxu0 0.0
    %652 = vmatmul.mubr.f32.gmra.mxu0 %v574
    %v653 = vpop.f32.mrf.mxu0
    %v654 = vadd.f32 %v569, %v653
    %v655 = vpop.f32.mrf.mxu0
    %656 = vmatprep.mubr.f32.mxu0 0.0
    %657 = vmatmul.mubr.f32.gmra.mxu0 %v577
    %v658 = vpop.f32.mrf.mxu0
    %v659 = vadd.f32 %v569, %v658
    %v660 = vpop.f32.mrf.mxu0
    %661 = vmatprep.mubr.f32.mxu0 0.0
    %662 = vmatmul.mubr.f32.gmra.mxu0 %v580
    %v663 = vpop.f32.mrf.mxu0
    %v664 = vadd.f32 %v569, %v663
    %v665 = vpop.f32.mrf.mxu0
    %666 = vdwg.mxu0
    %v667 = vmul.f32 %v649, 0.5
    %v668 = vmul.f32 %v654, 0.5
    %v669 = vmul.f32 %v659, 0.5
    %v670 = vmul.f32 %v664, 0.5
    %v671 = vmul.f32 %v649, 0.044715
    %v672 = vmul.f32 %v654, 0.044715
    %v673 = vmul.f32 %v659, 0.044715
    %v674 = vmul.f32 %v664, 0.044715
    %v675 = vmul.f32 %v671, %v649
    %v676 = vmul.f32 %v672, %v654
    %v677 = vmul.f32 %v673, %v659
    %v678 = vmul.f32 %v674, %v664
    %v679 = vmul.f32 %v675, %v649
    %v680 = vmul.f32 %v676, %v654
    %v681 = vmul.f32 %v677, %v659
    %v682 = vmul.f32 %v678, %v664
    %v683 = vadd.f32 %v649, %v679
    %v684 = vadd.f32 %v654, %v680
    %v685 = vadd.f32 %v659, %v681
    %v686 = vadd.f32 %v664, %v682
    %v687 = vmul.f32 %v683, 0.7978846
    %v688 = vmul.f32 %v684, 0.7978846
    %v689 = vmul.f32 %v685, 0.7978846
    %v690 = vmul.f32 %v686, 0.7978846
    %v691 = vtanh.pop %v687
    %v692 = vtanh.pop %v688
    %v693 = vtanh.pop %v689
    %v694 = vtanh.pop %v690
    %v695 = vadd.f32 %v691, 1.0
    %v696 = vadd.f32 %v692, 1.0
    %v697 = vadd.f32 %v693, 1.0
    %v698 = vadd.f32 %v694, 1.0
    %v699 = vmul.f32 %v667, %v695
    %v700 = vmul.f32 %v668, %v696
    %v701 = vmul.f32 %v669, %v697
    %v702 = vmul.f32 %v670, %v698
    %v703 = vld [vmem:[%s1 + $0x100] sm:$0xff]
    %v704 = vld [vmem:[%s1 + $0x108] sm:$0xff]
    %v705 = vld [vmem:[%s1 + $0x110] sm:$0xff]
    %v706 = vld [vmem:[%s1 + $0x118] sm:$0xff]
    %v707 = vld [vmem:[%s1 + $0x120] sm:$0xff]
    %v708 = vld [vmem:[%s1 + $0x128] sm:$0xff]
    %v709 = vld [vmem:[%s1 + $0x130] sm:$0xff]
    %v710 = vld [vmem:[%s1 + $0x138] sm:$0xff]
    %vm711 = vcmask 523264
    %v713 = vsel %vm711, %v699, 0
    %v716 = vsel %vm711, %v700, 0
    %v719 = vsel %vm711, %v701, 0
    %v722 = vsel %vm711, %v702, 0
    %724 = vmatprep.subr.mxu0 0.0
    %725 = vmatpush1.msra.mxu0 0.0
    %726 = vmatprep.subr.mxu0 0.0
    %727 = vmatpush1.msra.mxu0 0.0
    %728 = vmatprep.subr.mxu0 0.0
    %729 = vmatpush1.msra.mxu0 0.0
    %730 = vmatprep.subr.mxu0 0.0
    %731 = vmatpush1.msra.mxu0 0.0
    %732 = vmatprep.subr.mxu0 0.0
    %733 = vmatpush1.msra.mxu0 0.0
    %734 = vmatprep.subr.mxu0 0.0
    %735 = vmatpush1.msra.mxu0 0.0
    %736 = vmatprep.subr.mxu0 0.0
    %737 = vmatpush1.msra.mxu0 0.0
    %738 = vmatprep.subr.mxu0 0.0
    %739 = vmatpush1.msra.mxu0 0.0
    %740 = vmatprep.subr.mxu0 0.0
    %741 = vmatpush1.msra.mxu0 %v710
    %742 = vmatprep.subr.mxu0 0.0
    %743 = vmatpush1.msra.mxu0 %v709
    %744 = vmatprep.subr.mxu0 0.0
    %745 = vmatpush1.msra.mxu0 %v708
    %746 = vmatprep.subr.mxu0 0.0
    %747 = vmatpush1.msra.mxu0 %v707
    %748 = vmatprep.subr.mxu0 0.0
    %749 = vmatpush1.msra.mxu0 %v706
    %750 = vmatprep.subr.mxu0 0.0
    %751 = vmatpush1.msra.mxu0 %v705
    %752 = vmatprep.subr.mxu0 0.0
    %753 = vmatpush1.msra.mxu0 %v704
    %754 = vmatprep.subr.mxu0 0.0
    %755 = vmatpush1.msra.mxu0 %v703
    %756 = vmatprep.subr.mxu0 0.0
    %757 = vmatpush2.msra.mxu0 0.0
    %758 = vmatprep.subr.mxu0 0.0
    %759 = vmatpush2.msra.mxu0 0.0
    %760 = vmatprep.subr.mxu0 0.0
    %761 = vmatpush2.msra.mxu0 0.0
    %762 = vmatprep.subr.mxu0 0.0
    %763 = vmatpush2.msra.mxu0 0.0
    %764 = vmatprep.subr.mxu0 0.0
    %765 = vmatpush2.msra.mxu0 0.0
    %766 = vmatprep.subr.mxu0 0.0
    %767 = vmatpush2.msra.mxu0 0.0
    %768 = vmatprep.subr.mxu0 0.0
    %769 = vmatpush2.msra.mxu0 0.0
    %770 = vmatprep.subr.mxu0 0.0
    %771 = vmatpush2.msra.mxu0 0.0
    %772 = vmatprep.subr.mxu0 0.0
    %773 = vmatpush2.msra.mxu0 0.0
    %774 = vmatprep.subr.mxu0 0.0
    %775 = vmatpush2.msra.mxu0 0.0
    %776 = vmatprep.subr.mxu0 0.0
    %777 = vmatpush2.msra.mxu0 0.0
    %778 = vmatprep.subr.mxu0 0.0
    %779 = vmatpush2.msra.mxu0 0.0
    %780 = vmatprep.subr.mxu0 0.0
    %781 = vmatpush2.msra.mxu0 0.0
    %782 = vmatprep.subr.mxu0 0.0
    %783 = vmatpush2.msra.mxu0 0.0
    %784 = vmatprep.subr.mxu0 0.0
    %785 = vmatpush2.msra.mxu0 0.0
    %786 = vmatprep.subr.mxu0 0.0
    %787 = vmatpush2.msra.mxu0 0.0
    %788 = vmatprep.mubr.f32.mxu0 0.0
    %789 = vmatmul.mubr.f32.gmra.mxu0 %v713
    %v790 = vpop.f32.mrf.mxu0
    %v791 = vadd.f32 0.0, %v790
    %v792 = vpop.f32.mrf.mxu0
    %793 = vmatprep.mubr.f32.mxu0 0.0
    %794 = vmatmul.mubr.f32.gmra.mxu0 %v716
    %v795 = vpop.f32.mrf.mxu0
    %v796 = vadd.f32 0.0, %v795
    %v797 = vpop.f32.mrf.mxu0
    %798 = vmatprep.mubr.f32.mxu0 0.0
    %799 = vmatmul.mubr.f32.gmra.mxu0 %v719
    %v800 = vpop.f32.mrf.mxu0
    %v801 = vadd.f32 0.0, %v800
    %v802 = vpop.f32.mrf.mxu0
    %803 = vmatprep.mubr.f32.mxu0 0.0
    %804 = vmatmul.mubr.f32.gmra.mxu0 %v722
    %v805 = vpop.f32.mrf.mxu0
    %v806 = vadd.f32 0.0, %v805
    %v807 = vpop.f32.mrf.mxu0
    %808 = vdwg.mxu0
    %v809 = vadd.f32 %v487, %v791
    %v810 = vadd.f32 %v488, %v796
    %v811 = vadd.f32 %v489, %v801
    %v812 = vadd.f32 %v490, %v806
    %v813 = vld [vmem:[%s1 + $0x140] sm:$0x1]
    %v814 = vlaneseq
    %v815 = vshrl.u32 %v814, 7
    %v816 = vsub.s32 0, %v815
    %v817 = vrot.slane %v813, %v816
    %v818 = vadd.f32 %v809, %v817
    %v819 = vadd.f32 %v810, %v817
    %v820 = vadd.f32 %v811, %v817
    %v821 = vadd.f32 %v812, %v817
    %v822 = vld [vmem:[%s1 + $0x148] sm:$0x1]
    %v823 = vld [vmem:[%s1 + $0x150] sm:$0x1]
    %v824 = vsel %vm127, %v818, 0.0
    %825 = vadd.xlane.f32.xlu0 %v824
    %v826 = vpop.xlane.xlu0 %825
    %v827 = vsel %vm127, %v819, 0.0
    %828 = vadd.xlane.f32.xlu0 %v827
    %v829 = vpop.xlane.xlu0 %828
    %v830 = vsel %vm127, %v820, 0.0
    %831 = vadd.xlane.f32.xlu0 %v830
    %v832 = vpop.xlane.xlu0 %831
    %v833 = vsel %vm127, %v821, 0.0
    %834 = vadd.xlane.f32.xlu0 %v833
    %v835 = vpop.xlane.xlu0 %834
    %v836 = vmul.f32 %v826, %v140
    %v837 = vmul.f32 %v829, %v140
    %v838 = vmul.f32 %v832, %v140
    %v839 = vmul.f32 %v835, %v140
    %v840 = vsub.f32 %v818, %v836
    %v841 = vsub.f32 %v819, %v837
    %v842 = vsub.f32 %v820, %v838
    %v843 = vsub.f32 %v821, %v839
    %v844 = vmul.f32 %v840, %v840
    %v845 = vmul.f32 %v841, %v841
    %v846 = vmul.f32 %v842, %v842
    %v847 = vmul.f32 %v843, %v843
    %v848 = vsel %vm127, %v844, 0.0
    %849 = vadd.xlane.f32.xlu0 %v848
    %v850 = vpop.xlane.xlu0 %849
    %v851 = vsel %vm127, %v845, 0.0
    %852 = vadd.xlane.f32.xlu0 %v851
    %v853 = vpop.xlane.xlu0 %852
    %v854 = vsel %vm127, %v846, 0.0
    %855 = vadd.xlane.f32.xlu0 %v854
    %v856 = vpop.xlane.xlu0 %855
    %v857 = vsel %vm127, %v847, 0.0
    %858 = vadd.xlane.f32.xlu0 %v857
    %v859 = vpop.xlane.xlu0 %858
    %v860 = vmul.f32 %v850, %v140
    %v861 = vmul.f32 %v853, %v140
    %v862 = vmul.f32 %v856, %v140
    %v863 = vmul.f32 %v859, %v140
    %v864 = vadd.f32 %v860, 1e-05
    %v865 = vadd.f32 %v861, 1e-05
    %v866 = vadd.f32 %v862, 1e-05
    %v867 = vadd.f32 %v863, 1e-05
    %v868 = vrsqrt.pop %v864
    %v869 = vrsqrt.pop %v865
    %v870 = vrsqrt.pop %v866
    %v871 = vrsqrt.pop %v867
    %v872 = vmul.f32 %v840, %v868
    %v873 = vmul.f32 %v841, %v869
    %v874 = vmul.f32 %v842, %v870
    %v875 = vmul.f32 %v843, %v871
    %v876 = vlaneseq
    %v877 = vshrl.u32 %v876, 7
    %v878 = vsub.s32 0, %v877
    %v879 = vrot.slane %v822, %v878
    %v880 = vmul.f32 %v872, %v879
    %v881 = vmul.f32 %v873, %v879
    %v882 = vmul.f32 %v874, %v879
    %v883 = vmul.f32 %v875, %v879
    %v884 = vlaneseq
    %v885 = vshrl.u32 %v884, 7
    %v886 = vsub.s32 0, %v885
    %v887 = vrot.slane %v823, %v886
    %v888 = vadd.f32 %v880, %v887
    %v889 = vadd.f32 %v881, %v887
    %v890 = vadd.f32 %v882, %v887
    %v891 = vadd.f32 %v883, %v887
    %v892 = vld [vmem:[%s1 + $0x158] sm:$0xff]
    %v893 = vld [vmem:[%s1 + $0x160] sm:$0xff]
    %v894 = vld [vmem:[%s1 + $0x168] sm:$0xff]
    %v895 = vld [vmem:[%s1 + $0x170] sm:$0xff]
    %v896 = vld [vmem:[%s1 + $0x178] sm:$0xff]
    %v897 = vld [vmem:[%s1 + $0x180] sm:$0xff]
    %v898 = vld [vmem:[%s1 + $0x188] sm:$0xff]
    %v899 = vld [vmem:[%s1 + $0x190] sm:$0xff]
    %901 = vset.pattern.permute.xlu0 0
    %902 = vperm.xlu0 %901, %v896
    %v903 = vpop.permute.xlu0 %902
    %906 = vset.pattern.permute.xlu0 0
    %907 = vperm.xlu0 %906, %v897
    %v908 = vpop.permute.xlu0 %907
    %911 = vset.pattern.permute.xlu0 0
    %912 = vperm.xlu0 %911, %v898
    %v913 = vpop.permute.xlu0 %912
    %916 = vset.pattern.permute.xlu0 0
    %917 = vperm.xlu0 %916, %v899
    %v918 = vpop.permute.xlu0 %917
    %v921 = vsel %vm127, %v892, 0
    %v924 = vsel %vm127, %v893, 0
    %v927 = vsel %vm127, %v894, 0
    %v930 = vsel %vm127, %v895, 0
    %932 = vmatprep.subr.mxu0 0.0
    %933 = vmatpush1.msra.mxu0 0.0
    %934 = vmatprep.subr.mxu0 0.0
    %935 = vmatpush1.msra.mxu0 0.0
    %936 = vmatprep.subr.mxu0 0.0
    %937 = vmatpush1.msra.mxu0 0.0
    %938 = vmatprep.subr.mxu0 0.0
    %939 = vmatpush1.msra.mxu0 0.0
    %940 = vmatprep.subr.mxu0 0.0
    %941 = vmatpush1.msra.mxu0 0.0
    %942 = vmatprep.subr.mxu0 0.0
    %943 = vmatpush1.msra.mxu0 0.0
    %944 = vmatprep.subr.mxu0 0.0
    %945 = vmatpush1.msra.mxu0 0.0
    %946 = vmatprep.subr.mxu0 0.0
    %947 = vmatpush1.msra.mxu0 0.0
    %948 = vmatprep.subr.mxu0 0.0
    %949 = vmatpush1.msra.mxu0 0.0
    %950 = vmatprep.subr.mxu0 0.0
    %951 = vmatpush1.msra.mxu0 0.0
    %952 = vmatprep.subr.mxu0 0.0
    %953 = vmatpush1.msra.mxu0 0.0
    %954 = vmatprep.subr.mxu0 0.0
    %955 = vmatpush1.msra.mxu0 0.0
    %956 = vmatprep.subr.mxu0 0.0
    %957 = vmatpush1.msra.mxu0 %v891
    %958 = vmatprep.subr.mxu0 0.0
    %959 = vmatpush1.msra.mxu0 %v890
    %960 = vmatprep.subr.mxu0 0.0
    %961 = vmatpush1.msra.mxu0 %v889
    %962 = vmatprep.subr.mxu0 0.0
    %963 = vmatpush1.msra.mxu0 %v888
    %964 = vmatprep.subr.mxu0 0.0
    %965 = vmatpush2.msra.mxu0 0.0
    %966 = vmatprep.subr.mxu0 0.0
    %967 = vmatpush2.msra.mxu0 0.0
    %968 = vmatprep.subr.mxu0 0.0
    %969 = vmatpush2.msra.mxu0 0.0
    %970 = vmatprep.subr.mxu0 0.0
    %971 = vmatpush2.msra.mxu0 0.0
    %972 = vmatprep.subr.mxu0 0.0
    %973 = vmatpush2.msra.mxu0 0.0
    %974 = vmatprep.subr.mxu0 0.0
    %975 = vmatpush2.msra.mxu0 0.0
    %976 = vmatprep.subr.mxu0 0.0
    %977 = vmatpush2.msra.mxu0 0.0
    %978 = vmatprep.subr.mxu0 0.0
    %979 = vmatpush2.msra.mxu0 0.0
    %980 = vmatprep.subr.mxu0 0.0
    %981 = vmatpush2.msra.mxu0 0.0
    %982 = vmatprep.subr.mxu0 0.0
    %983 = vmatpush2.msra.mxu0 0.0
    %984 = vmatprep.subr.mxu0 0.0
    %985 = vmatpush2.msra.mxu0 0.0
    %986 = vmatprep.subr.mxu0 0.0
    %987 = vmatpush2.msra.mxu0 0.0
    %988 = vmatprep.subr.mxu0 0.0
    %989 = vmatpush2.msra.mxu0 0.0
    %990 = vmatprep.subr.mxu0 0.0
    %991 = vmatpush2.msra.mxu0 0.0
    %992 = vmatprep.subr.mxu0 0.0
    %993 = vmatpush2.msra.mxu0 0.0
    %994 = vmatprep.subr.mxu0 0.0
    %995 = vmatpush2.msra.mxu0 0.0
    %996 = vmatprep.mubr.f32.mxu0 0.0
    %997 = vmatmul.mubr.f32.gmra.mxu0 %v921
    %v998 = vpop.f32.mrf.mxu0
    %v999 = vadd.f32 %v903, %v998
    %v1000 = vpop.f32.mrf.mxu0
    %1001 = vmatprep.mubr.f32.mxu0 0.0
    %1002 = vmatmul.mubr.f32.gmra.mxu0 %v924
    %v1003 = vpop.f32.mrf.mxu0
    %v1004 = vadd.f32 %v908, %v1003
    %v1005 = vpop.f32.mrf.mxu0
    %1006 = vmatprep.mubr.f32.mxu0 0.0
    %1007 = vmatmul.mubr.f32.gmra.mxu0 %v927
    %v1008 = vpop.f32.mrf.mxu0
    %v1009 = vadd.f32 %v913, %v1008
    %v1010 = vpop.f32.mrf.mxu0
    %1011 = vmatprep.mubr.f32.mxu0 0.0
    %1012 = vmatmul.mubr.f32.gmra.mxu0 %v930
    %v1013 = vpop.f32.mrf.mxu0
    %v1014 = vadd.f32 %v918, %v1013
    %v1015 = vpop.f32.mrf.mxu0
    %1016 = vdwg.mxu0
    %v1017 = vmul.f32 %v999, 0.5
    %v1018 = vmul.f32 %v1004, 0.5
    %v1019 = vmul.f32 %v1009, 0.5
    %v1020 = vmul.f32 %v1014, 0.5
    %v1021 = vmul.f32 %v999, 0.044715
    %v1022 = vmul.f32 %v1004, 0.044715
    %v1023 = vmul.f32 %v1009, 0.044715
    %v1024 = vmul.f32 %v1014, 0.044715
    %v1025 = vmul.f32 %v1021, %v999
    %v1026 = vmul.f32 %v1022, %v1004
    %v1027 = vmul.f32 %v1023, %v1009
    %v1028 = vmul.f32 %v1024, %v1014
    %v1029 = vmul.f32 %v1025, %v999
    %v1030 = vmul.f32 %v1026, %v1004
    %v1031 = vmul.f32 %v1027, %v1009
    %v1032 = vmul.f32 %v1028, %v1014
    %v1033 = vadd.f32 %v999, %v1029
    %v1034 = vadd.f32 %v1004, %v1030
    %v1035 = vadd.f32 %v1009, %v1031
    %v1036 = vadd.f32 %v1014, %v1032
    %v1037 = vmul.f32 %v1033, 0.7978846
    %v1038 = vmul.f32 %v1034, 0.7978846
    %v1039 = vmul.f32 %v1035, 0.7978846
    %v1040 = vmul.f32 %v1036, 0.7978846
    %v1041 = vtanh.pop %v1037
    %v1042 = vtanh.pop %v1038
    %v1043 = vtanh.pop %v1039
    %v1044 = vtanh.pop %v1040
    %v1045 = vadd.f32 %v1041, 1.0
    %v1046 = vadd.f32 %v1042, 1.0
    %v1047 = vadd.f32 %v1043, 1.0
    %v1048 = vadd.f32 %v1044, 1.0
    %v1049 = vmul.f32 %v1017, %v1045
    %v1050 = vmul.f32 %v1018, %v1046
    %v1051 = vmul.f32 %v1019, %v1047
    %v1052 = vmul.f32 %v1020, %v1048
    %v1053 = vld [vmem:[%s1 + $0x198] sm:$0xff]
    %v1054 = vld [vmem:[%s1 + $0x1a0] sm:$0xff]
    %v1055 = vld [vmem:[%s1 + $0x1a8] sm:$0xff]
    %v1056 = vld [vmem:[%s1 + $0x1b0] sm:$0xff]
    %v1058 = vsel %vm127, %v1053, 0
    %v1061 = vsel %vm127, %v1054, 0
    %v1064 = vsel %vm127, %v1055, 0
    %v1067 = vsel %vm127, %v1056, 0
    %1069 = vmatprep.subr.mxu0 0.0
    %1070 = vmatpush1.msra.mxu0 0.0
    %1071 = vmatprep.subr.mxu0 0.0
    %1072 = vmatpush1.msra.mxu0 0.0
    %1073 = vmatprep.subr.mxu0 0.0
    %1074 = vmatpush1.msra.mxu0 0.0
    %1075 = vmatprep.subr.mxu0 0.0
    %1076 = vmatpush1.msra.mxu0 0.0
    %1077 = vmatprep.subr.mxu0 0.0
    %1078 = vmatpush1.msra.mxu0 0.0
    %1079 = vmatprep.subr.mxu0 0.0
    %1080 = vmatpush1.msra.mxu0 0.0
    %1081 = vmatprep.subr.mxu0 0.0
    %1082 = vmatpush1.msra.mxu0 0.0
    %1083 = vmatprep.subr.mxu0 0.0
    %1084 = vmatpush1.msra.mxu0 0.0
    %1085 = vmatprep.subr.mxu0 0.0
    %1086 = vmatpush1.msra.mxu0 0.0
    %1087 = vmatprep.subr.mxu0 0.0
    %1088 = vmatpush1.msra.mxu0 0.0
    %1089 = vmatprep.subr.mxu0 0.0
    %1090 = vmatpush1.msra.mxu0 0.0
    %1091 = vmatprep.subr.mxu0 0.0
    %1092 = vmatpush1.msra.mxu0 0.0
    %1093 = vmatprep.subr.mxu0 0.0
    %1094 = vmatpush1.msra.mxu0 %v1052
    %1095 = vmatprep.subr.mxu0 0.0
    %1096 = vmatpush1.msra.mxu0 %v1051
    %1097 = vmatprep.subr.mxu0 0.0
    %1098 = vmatpush1.msra.mxu0 %v1050
    %1099 = vmatprep.subr.mxu0 0.0
    %1100 = vmatpush1.msra.mxu0 %v1049
    %1101 = vmatprep.subr.mxu0 0.0
    %1102 = vmatpush2.msra.mxu0 0.0
    %1103 = vmatprep.subr.mxu0 0.0
    %1104 = vmatpush2.msra.mxu0 0.0
    %1105 = vmatprep.subr.mxu0 0.0
    %1106 = vmatpush2.msra.mxu0 0.0
    %1107 = vmatprep.subr.mxu0 0.0
    %1108 = vmatpush2.msra.mxu0 0.0
    %1109 = vmatprep.subr.mxu0 0.0
    %1110 = vmatpush2.msra.mxu0 0.0
    %1111 = vmatprep.subr.mxu0 0.0
    %1112 = vmatpush2.msra.mxu0 0.0
    %1113 = vmatprep.subr.mxu0 0.0
    %1114 = vmatpush2.msra.mxu0 0.0
    %1115 = vmatprep.subr.mxu0 0.0
    %1116 = vmatpush2.msra.mxu0 0.0
    %1117 = vmatprep.subr.mxu0 0.0
    %1118 = vmatpush2.msra.mxu0 0.0
    %1119 = vmatprep.subr.mxu0 0.0
    %1120 = vmatpush2.msra.mxu0 0.0
    %1121 = vmatprep.subr.mxu0 0.0
    %1122 = vmatpush2.msra.mxu0 0.0
    %1123 = vmatprep.subr.mxu0 0.0
    %1124 = vmatpush2.msra.mxu0 0.0
    %1125 = vmatprep.subr.mxu0 0.0
    %1126 = vmatpush2.msra.mxu0 0.0
    %1127 = vmatprep.subr.mxu0 0.0
    %1128 = vmatpush2.msra.mxu0 0.0
    %1129 = vmatprep.subr.mxu0 0.0
    %1130 = vmatpush2.msra.mxu0 0.0
    %1131 = vmatprep.subr.mxu0 0.0
    %1132 = vmatpush2.msra.mxu0 0.0
    %1133 = vmatprep.mubr.f32.mxu0 0.0
    %1134 = vmatmul.mubr.f32.gmra.mxu0 %v1058
    %v1135 = vpop.f32.mrf.mxu0
    %v1136 = vadd.f32 0.0, %v1135
    %v1137 = vpop.f32.mrf.mxu0
    %1138 = vmatprep.mubr.f32.mxu0 0.0
    %1139 = vmatmul.mubr.f32.gmra.mxu0 %v1061
    %v1140 = vpop.f32.mrf.mxu0
    %v1141 = vadd.f32 0.0, %v1140
    %v1142 = vpop.f32.mrf.mxu0
    %1143 = vmatprep.mubr.f32.mxu0 0.0
    %1144 = vmatmul.mubr.f32.gmra.mxu0 %v1064
    %v1145 = vpop.f32.mrf.mxu0
    %v1146 = vadd.f32 0.0, %v1145
    %v1147 = vpop.f32.mrf.mxu0
    %1148 = vmatprep.mubr.f32.mxu0 0.0
    %1149 = vmatmul.mubr.f32.gmra.mxu0 %v1067
    %v1150 = vpop.f32.mrf.mxu0
    %v1151 = vadd.f32 0.0, %v1150
    %v1152 = vpop.f32.mrf.mxu0
    %1153 = vdwg.mxu0
    %v1154 = vadd.f32 %v818, %v1136
    %v1155 = vadd.f32 %v819, %v1141
    %v1156 = vadd.f32 %v820, %v1146
    %v1157 = vadd.f32 %v821, %v1151
    %v1158 = vld [vmem:[%s1 + $0x1b8] sm:$0xff]
    %v1159 = vld [vmem:[%s1 + $0x1c0] sm:$0xff]
    %v1160 = vld [vmem:[%s1 + $0x1c8] sm:$0xff]
    %v1161 = vld [vmem:[%s1 + $0x1d0] sm:$0xff]
    %1163 = vset.pattern.permute.xlu0 0
    %1164 = vperm.xlu0 %1163, %v1158
    %v1165 = vpop.permute.xlu0 %1164
    %1168 = vset.pattern.permute.xlu0 0
    %1169 = vperm.xlu0 %1168, %v1159
    %v1170 = vpop.permute.xlu0 %1169
    %1173 = vset.pattern.permute.xlu0 0
    %1174 = vperm.xlu0 %1173, %v1160
    %v1175 = vpop.permute.xlu0 %1174
    %1178 = vset.pattern.permute.xlu0 0
    %1179 = vperm.xlu0 %1178, %v1161
    %v1180 = vpop.permute.xlu0 %1179
    %v1182 = vadd.f32 %v1154, %v1165
    %v1183 = vadd.f32 %v1155, %v1170
    %v1184 = vadd.f32 %v1156, %v1175
    %v1185 = vadd.f32 %v1157, %v1180
    %v1186 = vld [vmem:[%s1 + $0x1d8] sm:$0x1]
    %v1187 = vld [vmem:[%s1 + $0x1e0] sm:$0x1]
    %v1188 = vsel %vm127, %v1182, 0.0
    %1189 = vadd.xlane.f32.xlu0 %v1188
    %v1190 = vpop.xlane.xlu0 %1189
    %v1191 = vsel %vm127, %v1183, 0.0
    %1192 = vadd.xlane.f32.xlu0 %v1191
    %v1193 = vpop.xlane.xlu0 %1192
    %v1194 = vsel %vm127, %v1184, 0.0
    %1195 = vadd.xlane.f32.xlu0 %v1194
    %v1196 = vpop.xlane.xlu0 %1195
    %v1197 = vsel %vm127, %v1185, 0.0
    %1198 = vadd.xlane.f32.xlu0 %v1197
    %v1199 = vpop.xlane.xlu0 %1198
    %v1200 = vmul.f32 %v1190, %v140
    %v1201 = vmul.f32 %v1193, %v140
    %v1202 = vmul.f32 %v1196, %v140
    %v1203 = vmul.f32 %v1199, %v140
    %v1204 = vsub.f32 %v1182, %v1200
    %v1205 = vsub.f32 %v1183, %v1201
    %v1206 = vsub.f32 %v1184, %v1202
    %v1207 = vsub.f32 %v1185, %v1203
    %v1208 = vmul.f32 %v1204, %v1204
    %v1209 = vmul.f32 %v1205, %v1205
    %v1210 = vmul.f32 %v1206, %v1206
    %v1211 = vmul.f32 %v1207, %v1207
    %v1212 = vsel %vm127, %v1208, 0.0
    %1213 = vadd.xlane.f32.xlu0 %v1212
    %v1214 = vpop.xlane.xlu0 %1213
    %v1215 = vsel %vm127, %v1209, 0.0
    %1216 = vadd.xlane.f32.xlu0 %v1215
    %v1217 = vpop.xlane.xlu0 %1216
    %v1218 = vsel %vm127, %v1210, 0.0
    %1219 = vadd.xlane.f32.xlu0 %v1218
    %v1220 = vpop.xlane.xlu0 %1219
    %v1221 = vsel %vm127, %v1211, 0.0
    %1222 = vadd.xlane.f32.xlu0 %v1221
    %v1223 = vpop.xlane.xlu0 %1222
    %v1224 = vmul.f32 %v1214, %v140
    %v1225 = vmul.f32 %v1217, %v140
    %v1226 = vmul.f32 %v1220, %v140
    %v1227 = vmul.f32 %v1223, %v140
    %v1228 = vadd.f32 %v1224, 1e-05
    %v1229 = vadd.f32 %v1225, 1e-05
    %v1230 = vadd.f32 %v1226, 1e-05
    %v1231 = vadd.f32 %v1227, 1e-05
    %v1232 = vrsqrt.pop %v1228
    %v1233 = vrsqrt.pop %v1229
    %v1234 = vrsqrt.pop %v1230
    %v1235 = vrsqrt.pop %v1231
    %v1236 = vmul.f32 %v1204, %v1232
    %v1237 = vmul.f32 %v1205, %v1233
    %v1238 = vmul.f32 %v1206, %v1234
    %v1239 = vmul.f32 %v1207, %v1235
    %v1240 = vlaneseq
    %v1241 = vshrl.u32 %v1240, 7
    %v1242 = vsub.s32 0, %v1241
    %v1243 = vrot.slane %v1186, %v1242
    %v1244 = vmul.f32 %v1236, %v1243
    %v1245 = vmul.f32 %v1237, %v1243
    %v1246 = vmul.f32 %v1238, %v1243
    %v1247 = vmul.f32 %v1239, %v1243
    %v1248 = vlaneseq
    %v1249 = vshrl.u32 %v1248, 7
    %v1250 = vsub.s32 0, %v1249
    %v1251 = vrot.slane %v1187, %v1250
    %v1252 = vadd.f32 %v1244, %v1251
    %v1253 = vadd.f32 %v1245, %v1251
    %v1254 = vadd.f32 %v1246, %v1251
    %v1255 = vadd.f32 %v1247, %v1251
    %v1256 = vld [vmem:[%s1 + $0x1e8] sm:$0xff]
    %v1257 = vld [vmem:[%s1 + $0x1f0] sm:$0xff]
    %v1258 = vld [vmem:[%s1 + $0x1f8] sm:$0xff]
    %v1259 = vld [vmem:[%s1 + $0x200] sm:$0xff]
    %v1260 = vld [vmem:[%s1 + $0x208] sm:$0x1]
    %v1261 = vlaneseq
    %v1262 = vshrl.u32 %v1261, 7
    %v1263 = vsub.s32 0, %v1262
    %v1264 = vrot.slane %v1260, %v1263
    %v1266 = vsel %vm127, %v1252, 0
    %v1269 = vsel %vm127, %v1253, 0
    %v1272 = vsel %vm127, %v1254, 0
    %v1275 = vsel %vm127, %v1255, 0
    %1277 = vmatprep.subr.mxu0 0.0
    %1278 = vmatpush1.msra.mxu0 0.0
    %1279 = vmatprep.subr.mxu0 0.0
    %1280 = vmatpush1.msra.mxu0 0.0
    %1281 = vmatprep.subr.mxu0 0.0
    %1282 = vmatpush1.msra.mxu0 0.0
    %1283 = vmatprep.subr.mxu0 0.0
    %1284 = vmatpush1.msra.mxu0 0.0
    %1285 = vmatprep.subr.mxu0 0.0
    %1286 = vmatpush1.msra.mxu0 0.0
    %1287 = vmatprep.subr.mxu0 0.0
    %1288 = vmatpush1.msra.mxu0 0.0
    %1289 = vmatprep.subr.mxu0 0.0
    %1290 = vmatpush1.msra.mxu0 0.0
    %1291 = vmatprep.subr.mxu0 0.0
    %1292 = vmatpush1.msra.mxu0 0.0
    %1293 = vmatprep.subr.mxu0 0.0
    %1294 = vmatpush1.msra.mxu0 0.0
    %1295 = vmatprep.subr.mxu0 0.0
    %1296 = vmatpush1.msra.mxu0 0.0
    %1297 = vmatprep.subr.mxu0 0.0
    %1298 = vmatpush1.msra.mxu0 0.0
    %1299 = vmatprep.subr.mxu0 0.0
    %1300 = vmatpush1.msra.mxu0 0.0
    %1301 = vmatprep.subr.mxu0 0.0
    %1302 = vmatpush1.msra.mxu0 %v1259
    %1303 = vmatprep.subr.mxu0 0.0
    %1304 = vmatpush1.msra.mxu0 %v1258
    %1305 = vmatprep.subr.mxu0 0.0
    %1306 = vmatpush1.msra.mxu0 %v1257
    %1307 = vmatprep.subr.mxu0 0.0
    %1308 = vmatpush1.msra.mxu0 %v1256
    %1309 = vmatprep.subr.mxu0 0.0
    %1310 = vmatpush2.msra.mxu0 0.0
    %1311 = vmatprep.subr.mxu0 0.0
    %1312 = vmatpush2.msra.mxu0 0.0
    %1313 = vmatprep.subr.mxu0 0.0
    %1314 = vmatpush2.msra.mxu0 0.0
    %1315 = vmatprep.subr.mxu0 0.0
    %1316 = vmatpush2.msra.mxu0 0.0
    %1317 = vmatprep.subr.mxu0 0.0
    %1318 = vmatpush2.msra.mxu0 0.0
    %1319 = vmatprep.subr.mxu0 0.0
    %1320 = vmatpush2.msra.mxu0 0.0
    %1321 = vmatprep.subr.mxu0 0.0
    %1322 = vmatpush2.msra.mxu0 0.0
    %1323 = vmatprep.subr.mxu0 0.0
    %1324 = vmatpush2.msra.mxu0 0.0
    %1325 = vmatprep.subr.mxu0 0.0
    %1326 = vmatpush2.msra.mxu0 0.0
    %1327 = vmatprep.subr.mxu0 0.0
    %1328 = vmatpush2.msra.mxu0 0.0
    %1329 = vmatprep.subr.mxu0 0.0
    %1330 = vmatpush2.msra.mxu0 0.0
    %1331 = vmatprep.subr.mxu0 0.0
    %1332 = vmatpush2.msra.mxu0 0.0
    %1333 = vmatprep.subr.mxu0 0.0
    %1334 = vmatpush2.msra.mxu0 0.0
    %1335 = vmatprep.subr.mxu0 0.0
    %1336 = vmatpush2.msra.mxu0 0.0
    %1337 = vmatprep.subr.mxu0 0.0
    %1338 = vmatpush2.msra.mxu0 0.0
    %1339 = vmatprep.subr.mxu0 0.0
    %1340 = vmatpush2.msra.mxu0 0.0
    %1341 = vmatprep.mubr.f32.mxu0 0.0
    %1342 = vmatmul.mubr.f32.gmra.mxu0 %v1266
    %v1343 = vpop.f32.mrf.mxu0
    %v1344 = vadd.f32 %v1264, %v1343
    %v1345 = vpop.f32.mrf.mxu0
    %1346 = vmatprep.mubr.f32.mxu0 0.0
    %1347 = vmatmul.mubr.f32.gmra.mxu0 %v1269
    %v1348 = vpop.f32.mrf.mxu0
    %v1349 = vadd.f32 %v1264, %v1348
    %v1350 = vpop.f32.mrf.mxu0
    %1351 = vmatprep.mubr.f32.mxu0 0.0
    %1352 = vmatmul.mubr.f32.gmra.mxu0 %v1272
    %v1353 = vpop.f32.mrf.mxu0
    %v1354 = vadd.f32 %v1264, %v1353
    %v1355 = vpop.f32.mrf.mxu0
    %1356 = vmatprep.mubr.f32.mxu0 0.0
    %1357 = vmatmul.mubr.f32.gmra.mxu0 %v1275
    %v1358 = vpop.f32.mrf.mxu0
    %v1359 = vadd.f32 %v1264, %v1358
    %v1360 = vpop.f32.mrf.mxu0
    %1361 = vdwg.mxu0
    %v1362 = vmul.f32 %v1344, 0.5
    %v1363 = vmul.f32 %v1349, 0.5
    %v1364 = vmul.f32 %v1354, 0.5
    %v1365 = vmul.f32 %v1359, 0.5
    %v1366 = vmul.f32 %v1344, 0.044715
    %v1367 = vmul.f32 %v1349, 0.044715
    %v1368 = vmul.f32 %v1354, 0.044715
    %v1369 = vmul.f32 %v1359, 0.044715
    %v1370 = vmul.f32 %v1366, %v1344
    %v1371 = vmul.f32 %v1367, %v1349
    %v1372 = vmul.f32 %v1368, %v1354
    %v1373 = vmul.f32 %v1369, %v1359
    %v1374 = vmul.f32 %v1370, %v1344
    %v1375 = vmul.f32 %v1371, %v1349
    %v1376 = vmul.f32 %v1372, %v1354
    %v1377 = vmul.f32 %v1373, %v1359
    %v1378 = vadd.f32 %v1344, %v1374
    %v1379 = vadd.f32 %v1349, %v1375
    %v1380 = vadd.f32 %v1354, %v1376
    %v1381 = vadd.f32 %v1359, %v1377
    %v1382 = vmul.f32 %v1378, 0.7978846
    %v1383 = vmul.f32 %v1379, 0.7978846
    %v1384 = vmul.f32 %v1380, 0.7978846
    %v1385 = vmul.f32 %v1381, 0.7978846
    %v1386 = vtanh.pop %v1382
    %v1387 = vtanh.pop %v1383
    %v1388 = vtanh.pop %v1384
    %v1389 = vtanh.pop %v1385
    %v1390 = vadd.f32 %v1386, 1.0
    %v1391 = vadd.f32 %v1387, 1.0
    %v1392 = vadd.f32 %v1388, 1.0
    %v1393 = vadd.f32 %v1389, 1.0
    %v1394 = vmul.f32 %v1362, %v1390
    %v1395 = vmul.f32 %v1363, %v1391
    %v1396 = vmul.f32 %v1364, %v1392
    %v1397 = vmul.f32 %v1365, %v1393
    %v1398 = vld [vmem:[%s1 + $0x210] sm:$0xff]
    %v1399 = vld [vmem:[%s1 + $0x218] sm:$0xff]
    %v1400 = vld [vmem:[%s1 + $0x220] sm:$0xff]
    %v1401 = vld [vmem:[%s1 + $0x228] sm:$0xff]
    %v1402 = vld [vmem:[%s1 + $0x230] sm:$0xff]
    %v1403 = vld [vmem:[%s1 + $0x238] sm:$0xff]
    %v1404 = vld [vmem:[%s1 + $0x240] sm:$0xff]
    %v1405 = vld [vmem:[%s1 + $0x248] sm:$0xff]
    %v1407 = vsel %vm711, %v1394, 0
    %v1410 = vsel %vm711, %v1395, 0
    %v1413 = vsel %vm711, %v1396, 0
    %v1416 = vsel %vm711, %v1397, 0
    %1418 = vmatprep.subr.mxu0 0.0
    %1419 = vmatpush1.msra.mxu0 0.0
    %1420 = vmatprep.subr.mxu0 0.0
    %1421 = vmatpush1.msra.mxu0 0.0
    %1422 = vmatprep.subr.mxu0 0.0
    %1423 = vmatpush1.msra.mxu0 0.0
    %1424 = vmatprep.subr.mxu0 0.0
    %1425 = vmatpush1.msra.mxu0 0.0
    %1426 = vmatprep.subr.mxu0 0.0
    %1427 = vmatpush1.msra.mxu0 0.0
    %1428 = vmatprep.subr.mxu0 0.0
    %1429 = vmatpush1.msra.mxu0 0.0
    %1430 = vmatprep.subr.mxu0 0.0
    %1431 = vmatpush1.msra.mxu0 0.0
    %1432 = vmatprep.subr.mxu0 0.0
    %1433 = vmatpush1.msra.mxu0 0.0
    %1434 = vmatprep.subr.mxu0 0.0
    %1435 = vmatpush1.msra.mxu0 %v1405
    %1436 = vmatprep.subr.mxu0 0.0
    %1437 = vmatpush1.msra.mxu0 %v1404
    %1438 = vmatprep.subr.mxu0 0.0
    %1439 = vmatpush1.msra.mxu0 %v1403
    %1440 = vmatprep.subr.mxu0 0.0
    %1441 = vmatpush1.msra.mxu0 %v1402
    %1442 = vmatprep.subr.mxu0 0.0
    %1443 = vmatpush1.msra.mxu0 %v1401
    %1444 = vmatprep.subr.mxu0 0.0
    %1445 = vmatpush1.msra.mxu0 %v1400
    %1446 = vmatprep.subr.mxu0 0.0
    %1447 = vmatpush1.msra.mxu0 %v1399
    %1448 = vmatprep.subr.mxu0 0.0
    %1449 = vmatpush1.msra.mxu0 %v1398
    %1450 = vmatprep.subr.mxu0 0.0
    %1451 = vmatpush2.msra.mxu0 0.0
    %1452 = vmatprep.subr.mxu0 0.0
    %1453 = vmatpush2.msra.mxu0 0.0
    %1454 = vmatprep.subr.mxu0 0.0
    %1455 = vmatpush2.msra.mxu0 0.0
    %1456 = vmatprep.subr.mxu0 0.0
    %1457 = vmatpush2.msra.mxu0 0.0
    %1458 = vmatprep.subr.mxu0 0.0
    %1459 = vmatpush2.msra.mxu0 0.0
    %1460 = vmatprep.subr.mxu0 0.0
    %1461 = vmatpush2.msra.mxu0 0.0
    %1462 = vmatprep.subr.mxu0 0.0
    %1463 = vmatpush2.msra.mxu0 0.0
    %1464 = vmatprep.subr.mxu0 0.0
    %1465 = vmatpush2.msra.mxu0 0.0
    %1466 = vmatprep.subr.mxu0 0.0
    %1467 = vmatpush2.msra.mxu0 0.0
    %1468 = vmatprep.subr.mxu0 0.0
    %1469 = vmatpush2.msra.mxu0 0.0
    %1470 = vmatprep.subr.mxu0 0.0
    %1471 = vmatpush2.msra.mxu0 0.0
    %1472 = vmatprep.subr.mxu0 0.0
    %1473 = vmatpush2.msra.mxu0 0.0
    %1474 = vmatprep.subr.mxu0 0.0
    %1475 = vmatpush2.msra.mxu0 0.0
    %1476 = vmatprep.subr.mxu0 0.0
    %1477 = vmatpush2.msra.mxu0 0.0
    %1478 = vmatprep.subr.mxu0 0.0
    %1479 = vmatpush2.msra.mxu0 0.0
    %1480 = vmatprep.subr.mxu0 0.0
    %1481 = vmatpush2.msra.mxu0 0.0
    %1482 = vmatprep.mubr.f32.mxu0 0.0
    %1483 = vmatmul.mubr.f32.gmra.mxu0 %v1407
    %v1484 = vpop.f32.mrf.mxu0
    %v1485 = vadd.f32 0.0, %v1484
    %v1486 = vpop.f32.mrf.mxu0
    %1487 = vmatprep.mubr.f32.mxu0 0.0
    %1488 = vmatmul.mubr.f32.gmra.mxu0 %v1410
    %v1489 = vpop.f32.mrf.mxu0
    %v1490 = vadd.f32 0.0, %v1489
    %v1491 = vpop.f32.mrf.mxu0
    %1492 = vmatprep.mubr.f32.mxu0 0.0
    %1493 = vmatmul.mubr.f32.gmra.mxu0 %v1413
    %v1494 = vpop.f32.mrf.mxu0
    %v1495 = vadd.f32 0.0, %v1494
    %v1496 = vpop.f32.mrf.mxu0
    %1497 = vmatprep.mubr.f32.mxu0 0.0
    %1498 = vmatmul.mubr.f32.gmra.mxu0 %v1416
    %v1499 = vpop.f32.mrf.mxu0
    %v1500 = vadd.f32 0.0, %v1499
    %v1501 = vpop.f32.mrf.mxu0
    %1502 = vdwg.mxu0
    %v1503 = vadd.f32 %v1182, %v1485
    %v1504 = vadd.f32 %v1183, %v1490
    %v1505 = vadd.f32 %v1184, %v1495
    %v1506 = vadd.f32 %v1185, %v1500
    %v1507 = vld [vmem:[%s1 + $0x250] sm:$0x1]
    %v1508 = vlaneseq
    %v1509 = vshrl.u32 %v1508, 7
    %v1510 = vsub.s32 0, %v1509
    %v1511 = vrot.slane %v1507, %v1510
    %v1512 = vadd.f32 %v1503, %v1511
    %v1513 = vadd.f32 %v1504, %v1511
    %v1514 = vadd.f32 %v1505, %v1511
    %v1515 = vadd.f32 %v1506, %v1511
    %v1516 = vld [vmem:[%s1 + $0x258] sm:$0x1]
    %v1517 = vld [vmem:[%s1 + $0x260] sm:$0x1]
    %v1518 = vsel %vm127, %v1512, 0.0
    %1519 = vadd.xlane.f32.xlu0 %v1518
    %v1520 = vpop.xlane.xlu0 %1519
    %v1521 = vsel %vm127, %v1513, 0.0
    %1522 = vadd.xlane.f32.xlu0 %v1521
    %v1523 = vpop.xlane.xlu0 %1522
    %v1524 = vsel %vm127, %v1514, 0.0
    %1525 = vadd.xlane.f32.xlu0 %v1524
    %v1526 = vpop.xlane.xlu0 %1525
    %v1527 = vsel %vm127, %v1515, 0.0
    %1528 = vadd.xlane.f32.xlu0 %v1527
    %v1529 = vpop.xlane.xlu0 %1528
    %v1530 = vmul.f32 %v1520, %v140
    %v1531 = vmul.f32 %v1523, %v140
    %v1532 = vmul.f32 %v1526, %v140
    %v1533 = vmul.f32 %v1529, %v140
    %v1534 = vsub.f32 %v1512, %v1530
    %v1535 = vsub.f32 %v1513, %v1531
    %v1536 = vsub.f32 %v1514, %v1532
    %v1537 = vsub.f32 %v1515, %v1533
    %v1538 = vmul.f32 %v1534, %v1534
    %v1539 = vmul.f32 %v1535, %v1535
    %v1540 = vmul.f32 %v1536, %v1536
    %v1541 = vmul.f32 %v1537, %v1537
    %v1542 = vsel %vm127, %v1538, 0.0
    %1543 = vadd.xlane.f32.xlu0 %v1542
    %v1544 = vpop.xlane.xlu0 %1543
    %v1545 = vsel %vm127, %v1539, 0.0
    %1546 = vadd.xlane.f32.xlu0 %v1545
    %v1547 = vpop.xlane.xlu0 %1546
    %v1548 = vsel %vm127, %v1540, 0.0
    %1549 = vadd.xlane.f32.xlu0 %v1548
    %v1550 = vpop.xlane.xlu0 %1549
    %v1551 = vsel %vm127, %v1541, 0.0
    %1552 = vadd.xlane.f32.xlu0 %v1551
    %v1553 = vpop.xlane.xlu0 %1552
    %v1554 = vmul.f32 %v1544, %v140
    %v1555 = vmul.f32 %v1547, %v140
    %v1556 = vmul.f32 %v1550, %v140
    %v1557 = vmul.f32 %v1553, %v140
    %v1558 = vadd.f32 %v1554, 1e-05
    %v1559 = vadd.f32 %v1555, 1e-05
    %v1560 = vadd.f32 %v1556, 1e-05
    %v1561 = vadd.f32 %v1557, 1e-05
    %v1562 = vrsqrt.pop %v1558
    %v1563 = vrsqrt.pop %v1559
    %v1564 = vrsqrt.pop %v1560
    %v1565 = vrsqrt.pop %v1561
    %v1566 = vmul.f32 %v1534, %v1562
    %v1567 = vmul.f32 %v1535, %v1563
    %v1568 = vmul.f32 %v1536, %v1564
    %v1569 = vmul.f32 %v1537, %v1565
    %v1570 = vlaneseq
    %v1571 = vshrl.u32 %v1570, 7
    %v1572 = vsub.s32 0, %v1571
    %v1573 = vrot.slane %v1516, %v1572
    %v1574 = vmul.f32 %v1566, %v1573
    %v1575 = vmul.f32 %v1567, %v1573
    %v1576 = vmul.f32 %v1568, %v1573
    %v1577 = vmul.f32 %v1569, %v1573
    %v1578 = vlaneseq
    %v1579 = vshrl.u32 %v1578, 7
    %v1580 = vsub.s32 0, %v1579
    %v1581 = vrot.slane %v1517, %v1580
    %v1582 = vadd.f32 %v1574, %v1581
    %v1583 = vadd.f32 %v1575, %v1581
    %v1584 = vadd.f32 %v1576, %v1581
    %v1585 = vadd.f32 %v1577, %v1581
    %v1586 = vld [vmem:[%s1 + $0x268] sm:$0x3]
    %v1588 = vsel %vm127, %v1586, 0
    %1590 = vmatprep.subr.mxu0 0.0
    %1591 = vmatpush1.msra.mxu0 0.0
    %1592 = vmatprep.subr.mxu0 0.0
    %1593 = vmatpush1.msra.mxu0 0.0
    %1594 = vmatprep.subr.mxu0 0.0
    %1595 = vmatpush1.msra.mxu0 0.0
    %1596 = vmatprep.subr.mxu0 0.0
    %1597 = vmatpush1.msra.mxu0 0.0
    %1598 = vmatprep.subr.mxu0 0.0
    %1599 = vmatpush1.msra.mxu0 0.0
    %1600 = vmatprep.subr.mxu0 0.0
    %1601 = vmatpush1.msra.mxu0 0.0
    %1602 = vmatprep.subr.mxu0 0.0
    %1603 = vmatpush1.msra.mxu0 0.0
    %1604 = vmatprep.subr.mxu0 0.0
    %1605 = vmatpush1.msra.mxu0 0.0
    %1606 = vmatprep.subr.mxu0 0.0
    %1607 = vmatpush1.msra.mxu0 0.0
    %1608 = vmatprep.subr.mxu0 0.0
    %1609 = vmatpush1.msra.mxu0 0.0
    %1610 = vmatprep.subr.mxu0 0.0
    %1611 = vmatpush1.msra.mxu0 0.0
    %1612 = vmatprep.subr.mxu0 0.0
    %1613 = vmatpush1.msra.mxu0 0.0
    %1614 = vmatprep.subr.mxu0 0.0
    %1615 = vmatpush1.msra.mxu0 %v1585
    %1616 = vmatprep.subr.mxu0 0.0
    %1617 = vmatpush1.msra.mxu0 %v1584
    %1618 = vmatprep.subr.mxu0 0.0
    %1619 = vmatpush1.msra.mxu0 %v1583
    %1620 = vmatprep.subr.mxu0 0.0
    %1621 = vmatpush1.msra.mxu0 %v1582
    %1622 = vmatprep.subr.mxu0 0.0
    %1623 = vmatpush2.msra.mxu0 0.0
    %1624 = vmatprep.subr.mxu0 0.0
    %1625 = vmatpush2.msra.mxu0 0.0
    %1626 = vmatprep.subr.mxu0 0.0
    %1627 = vmatpush2.msra.mxu0 0.0
    %1628 = vmatprep.subr.mxu0 0.0
    %1629 = vmatpush2.msra.mxu0 0.0
    %1630 = vmatprep.subr.mxu0 0.0
    %1631 = vmatpush2.msra.mxu0 0.0
    %1632 = vmatprep.subr.mxu0 0.0
    %1633 = vmatpush2.msra.mxu0 0.0
    %1634 = vmatprep.subr.mxu0 0.0
    %1635 = vmatpush2.msra.mxu0 0.0
    %1636 = vmatprep.subr.mxu0 0.0
    %1637 = vmatpush2.msra.mxu0 0.0
    %1638 = vmatprep.subr.mxu0 0.0
    %1639 = vmatpush2.msra.mxu0 0.0
    %1640 = vmatprep.subr.mxu0 0.0
    %1641 = vmatpush2.msra.mxu0 0.0
    %1642 = vmatprep.subr.mxu0 0.0
    %1643 = vmatpush2.msra.mxu0 0.0
    %1644 = vmatprep.subr.mxu0 0.0
    %1645 = vmatpush2.msra.mxu0 0.0
    %1646 = vmatprep.subr.mxu0 0.0
    %1647 = vmatpush2.msra.mxu0 0.0
    %1648 = vmatprep.subr.mxu0 0.0
    %1649 = vmatpush2.msra.mxu0 0.0
    %1650 = vmatprep.subr.mxu0 0.0
    %1651 = vmatpush2.msra.mxu0 0.0
    %1652 = vmatprep.subr.mxu0 0.0
    %1653 = vmatpush2.msra.mxu0 0.0
    %1654 = vmatprep.mubr.f32.mxu0 0.0
    %1655 = vmatmul.mubr.f32.gmra.mxu0 %v1588
    %v1656 = vpop.f32.mrf.mxu0
    %v1657 = vadd.f32 0.0, %v1656
    %v1658 = vpop.f32.mrf.mxu0
    %1659 = vdwg.mxu0
    %v1660 = vld [vmem:[%s1 + $0x270] sm:$0xff]
    %v1661 = vld [vmem:[%s1 + $0x278] sm:$0xff]
    %v1662 = vld [vmem:[%s1 + $0x280] sm:$0xff]
    %v1663 = vld [vmem:[%s1 + $0x288] sm:$0xff]
    %v1664 = vld [vmem:[%s1 + $0x290] sm:$0x1]
    %v1665 = vlaneseq
    %v1666 = vshrl.u32 %v1665, 7
    %v1667 = vsub.s32 0, %v1666
    %v1668 = vrot.slane %v1664, %v1667
    %v1670 = vsel %vm127, %v1657, 0
    %1672 = vmatprep.subr.mxu0 0.0
    %1673 = vmatpush1.msra.mxu0 0.0
    %1674 = vmatprep.subr.mxu0 0.0
    %1675 = vmatpush1.msra.mxu0 0.0
    %1676 = vmatprep.subr.mxu0 0.0
    %1677 = vmatpush1.msra.mxu0 0.0
    %1678 = vmatprep.subr.mxu0 0.0
    %1679 = vmatpush1.msra.mxu0 0.0
    %1680 = vmatprep.subr.mxu0 0.0
    %1681 = vmatpush1.msra.mxu0 0.0
    %1682 = vmatprep.subr.mxu0 0.0
    %1683 = vmatpush1.msra.mxu0 0.0
    %1684 = vmatprep.subr.mxu0 0.0
    %1685 = vmatpush1.msra.mxu0 0.0
    %1686 = vmatprep.subr.mxu0 0.0
    %1687 = vmatpush1.msra.mxu0 0.0
    %1688 = vmatprep.subr.mxu0 0.0
    %1689 = vmatpush1.msra.mxu0 0.0
    %1690 = vmatprep.subr.mxu0 0.0
    %1691 = vmatpush1.msra.mxu0 0.0
    %1692 = vmatprep.subr.mxu0 0.0
    %1693 = vmatpush1.msra.mxu0 0.0
    %1694 = vmatprep.subr.mxu0 0.0
    %1695 = vmatpush1.msra.mxu0 0.0
    %1696 = vmatprep.subr.mxu0 0.0
    %1697 = vmatpush1.msra.mxu0 %v1663
    %1698 = vmatprep.subr.mxu0 0.0
    %1699 = vmatpush1.msra.mxu0 %v1662
    %1700 = vmatprep.subr.mxu0 0.0
    %1701 = vmatpush1.msra.mxu0 %v1661
    %1702 = vmatprep.subr.mxu0 0.0
    %1703 = vmatpush1.msra.mxu0 %v1660
    %1704 = vmatprep.subr.mxu0 0.0
    %1705 = vmatpush2.msra.mxu0 0.0
    %1706 = vmatprep.subr.mxu0 0.0
    %1707 = vmatpush2.msra.mxu0 0.0
    %1708 = vmatprep.subr.mxu0 0.0
    %1709 = vmatpush2.msra.mxu0 0.0
    %1710 = vmatprep.subr.mxu0 0.0
    %1711 = vmatpush2.msra.mxu0 0.0
    %1712 = vmatprep.subr.mxu0 0.0
    %1713 = vmatpush2.msra.mxu0 0.0
    %1714 = vmatprep.subr.mxu0 0.0
    %1715 = vmatpush2.msra.mxu0 0.0
    %1716 = vmatprep.subr.mxu0 0.0
    %1717 = vmatpush2.msra.mxu0 0.0
    %1718 = vmatprep.subr.mxu0 0.0
    %1719 = vmatpush2.msra.mxu0 0.0
    %1720 = vmatprep.subr.mxu0 0.0
    %1721 = vmatpush2.msra.mxu0 0.0
    %1722 = vmatprep.subr.mxu0 0.0
    %1723 = vmatpush2.msra.mxu0 0.0
    %1724 = vmatprep.subr.mxu0 0.0
    %1725 = vmatpush2.msra.mxu0 0.0
    %1726 = vmatprep.subr.mxu0 0.0
    %1727 = vmatpush2.msra.mxu0 0.0
    %1728 = vmatprep.subr.mxu0 0.0
    %1729 = vmatpush2.msra.mxu0 0.0
    %1730 = vmatprep.subr.mxu0 0.0
    %1731 = vmatpush2.msra.mxu0 0.0
    %1732 = vmatprep.subr.mxu0 0.0
    %1733 = vmatpush2.msra.mxu0 0.0
    %1734 = vmatprep.subr.mxu0 0.0
    %1735 = vmatpush2.msra.mxu0 0.0
    %1736 = vmatprep.mubr.f32.mxu0 0.0
    %1737 = vmatmul.mubr.f32.gmra.mxu0 %v1670
    %v1738 = vpop.f32.mrf.mxu0
    %v1739 = vadd.f32 %v1668, %v1738
    %v1740 = vpop.f32.mrf.mxu0
    %1741 = vdwg.mxu0
    %1742 = vst [vmem:[#allocation2] sm:$0x3] %v1739
    // Predicated region
    $region10: #{_forward.1} parent=1 // pred_check
      _
    $region11: #{_forward.1} parent=1 // pred_check_branch
      %1744 = sbr.rel (0) target = $region13
    $region12: #{_forward.1} parent=1 // pred_region
      %s1746 = ssub.s32 32, 32
      %1747 = vsyncadd [#allocation3], %s1746
      %s1749 = sshll.u32 [#allocation2], 4
      %s1750 = int_to_ptr.vmem [resolvable:$true] %s1749
      %1752 = dma.vmem_to_hbm [thread:$0]  %s1750, 32, %s2, [#allocation3]
    $region13: #{_forward.1} parent=1 // pred_fallthru
      _
    // Predicated region
    $region14: #{_forward.1} parent=1 // pred_check
      _
    $region15: #{_forward.1} parent=1 // pred_check_branch
      %1754 = sbr.rel (0) target = $region17
    $region16: #{_forward.1} parent=1 // pred_region
      %1755 = dma.done [#allocation3], 32
    $region17: #{_forward.1} parent=1 // pred_fallthru
      _
    %1756 = vsyncpa [#allocation3], 1

</llo_original>
